<compile_context>
chip_gen: v5e
topology: v5e:2x2
jax: 0.10.0
libtpu: 0.0.40
codegen_flags: <defaults>
</compile_context>

<pallas_src>
import functools

import jax
import jax.numpy as jnp
from jax.experimental import pallas as pl
from jax.experimental.pallas import tpu as pltpu

EPS = 1e-5
SIGMA = 25.0
IN_DIM = 16
DIMS = (32, 64, 128, 256)
EMBED_DIM = 256

# per-block output widths: enc1..enc4, dec(rnorm4), dec(rnorm3), dec(rnorm2)
OUTS = (32, 64, 128, 256, 128, 64, 32)
# each block's slot inside the fused embed-projection matmul (128-aligned, layer 4 needs 256)
DW_OFFS = (0, 128, 256, 384, 640, 768, 896)
DW_W = 1024

XT_W = 32          # fused input slab: [ x (16) | t (1) | zero pad ]

# ---- wk32 (K=32) column offsets ----
W1_OFF = 0         # w1 zero-padded to the 32-lane [x|t|0] slab        (32 cols)
F1_OFF = 128       # fused [w2 (64) | rw1_b (16)]                      (80 cols)
RW1T_OFF = 256     # final projection, decoder-state half              (16 cols)
# ---- wk64 (K=64) ----
F2_OFF = 0         # fused [w3 (128) | rw2_b (32)]                     (160 cols)
RW2T_OFF = 256     # decoder rnorm2, state half                        (32 cols)
# ---- wk128 (K=128) ----
F3_OFF = 0         # fused [w4 (256) | rw3_b (64)]                     (320 cols)
RW3T_OFF = 384     # decoder rnorm3, state half                        (64 cols)
# ---- wk256 (K=256) ----
WEMB_OFF = 0       # embed Linear (full 256x256, consumes [sin|cos])
DWP_OFF = 256      # dense embed-projections dw1..dw7 (DW_OFFS layout)
RW4_OFF = 1280     # decoder rnorm4 weight                             (128 cols)

# ---- vec slab lane offsets (all 128-aligned) ----
GFP_OFF = 0        # [w_gfp | w_gfp] * 2*pi                            (256)
PHASE_OFF = 256    # [0 .. 0 | pi/2 .. pi/2]                           (256)
BEMB_OFF = 512     # embed Linear bias                                 (256)
DB_OFF = 768       # dense biases db1..db7 (DW_OFFS layout)            (1024)
G_OFF = 1792       # batchnorm gammas (DW_OFFS layout)                 (1024)
BE_OFF = 2816      # batchnorm betas (DW_OFFS layout)                  (1024)
RB1_OFF = 3840     # final output bias                                 (16 -> 128)
VEC_W = 3968


def _swish(v):
    return v * jax.nn.sigmoid(v)


def scorenet_kernel(xt_ref, wk32_ref, wk64_ref, wk128_ref, wk256_ref, vec_ref, out_ref):
    dot = functools.partial(jnp.dot, preferred_element_type=jnp.float32)

    xt = xt_ref[...]                                     # [B, 32] = x | t | 0
    t = xt[:, IN_DIM:IN_DIM + 1]                         # [B, 1]

    # --- GaussianFourierProjection -> Linear -> swish -------------------------
    # One 256-lane sin gives both halves: sin(t*w) and sin(t*w + pi/2) = cos(t*w),
    # feeding a single K=256 matmul against the full embed Linear.
    proj = (t * vec_ref[:, GFP_OFF:GFP_OFF + EMBED_DIM]
            + vec_ref[:, PHASE_OFF:PHASE_OFF + EMBED_DIM])
    embed = _swish(dot(jnp.sin(proj), wk256_ref[:, WEMB_OFF:WEMB_OFF + EMBED_DIM])
                   + vec_ref[:, BEMB_OFF:BEMB_OFF + EMBED_DIM])

    # --- all seven embed->dense projections (+ their biases) in ONE wide matmul
    embed_all = (dot(embed, wk256_ref[:, DWP_OFF:DWP_OFF + DW_W])
                 + vec_ref[:, DB_OFF:DB_OFF + DW_W])     # [B, 1024]

    def block(i, lin):
        n = OUTS[i]
        off = DW_OFFS[i]
        h = lin + embed_all[:, off:off + n]
        # single-pass training-mode BatchNorm1d (batch mean, biased variance)
        mu = jnp.mean(h, axis=0, keepdims=True)
        var = jnp.maximum(jnp.mean(h * h, axis=0, keepdims=True) - mu * mu, 0.0)
        g = vec_ref[:, G_OFF + off:G_OFF + off + n]
        be = vec_ref[:, BE_OFF + off:BE_OFF + off + n]
        return _swish((h - mu) * jax.lax.rsqrt(var + EPS) * g + be)

    # --- encoder: each producer matmul also emits its decoder-skip columns ----
    h1 = block(0, dot(xt, wk32_ref[:, W1_OFF:W1_OFF + DIMS[0]]))
    p1 = dot(h1, wk32_ref[:, F1_OFF:F1_OFF + DIMS[1] + IN_DIM])      # [B, 80] = w2 | rw1_b
    h2 = block(1, p1[:, :DIMS[1]])
    skip1 = p1[:, DIMS[1]:DIMS[1] + IN_DIM]                          # h1 @ rw1_b
    p2 = dot(h2, wk64_ref[:, F2_OFF:F2_OFF + DIMS[2] + DIMS[0]])     # [B, 160] = w3 | rw2_b
    h3 = block(2, p2[:, :DIMS[2]])
    skip2 = p2[:, DIMS[2]:DIMS[2] + DIMS[0]]                         # h2 @ rw2_b
    p3 = dot(h3, wk128_ref[:, F3_OFF:F3_OFF + DIMS[3] + DIMS[1]])    # [B, 320] = w4 | rw3_b
    h4 = block(3, p3[:, :DIMS[3]])
    skip3 = p3[:, DIMS[3]:DIMS[3] + DIMS[1]]                         # h3 @ rw3_b

    # --- decoder: skip contributions precomputed -> single dot + VPU add ------
    h = block(4, dot(h4, wk256_ref[:, RW4_OFF:RW4_OFF + DIMS[2]]))
    h = block(5, dot(h, wk128_ref[:, RW3T_OFF:RW3T_OFF + DIMS[1]]) + skip3)
    h = block(6, dot(h, wk64_ref[:, RW2T_OFF:RW2T_OFF + DIMS[0]]) + skip2)
    h = (dot(h, wk32_ref[:, RW1T_OFF:RW1T_OFF + IN_DIM]) + skip1
         + vec_ref[:, RB1_OFF:RB1_OFF + IN_DIM])

    # --- divide by marginal_prob_std(t): one rsqrt (EUP) + one VPU multiply ---
    log_s = jnp.log(SIGMA)
    inv_std = jax.lax.rsqrt((jnp.exp(2.0 * t * log_s) - 1.0) / (2.0 * log_s))
    out_ref[...] = h * inv_std


# --------------------- host-side one-time parameter packing ---------------------
def pack_params(params):
    (w_gfp, w_emb, b_emb,
     w1, dw1, db1, g1, be1,
     w2, dw2, db2, g2, be2,
     w3, dw3, db3, g3, be3,
     w4, dw4, db4, g4, be4,
     rw4, dw5, db5, rg4, rbe4,
     rw3, dw6, db6, rg3, rbe3,
     rw2, dw7, db7, rg2, rbe2,
     rw1, rb1) = params

    def pad128(a):
        c = a.shape[1]
        w = -(-c // 128) * 128
        return a if w == c else jnp.pad(a, ((0, 0), (0, w - c)))

    # split decoder skip weights -> top (decoder state) / bottom (encoder skip) halves
    rw3_t, rw3_b = rw3[:DIMS[2]], rw3[DIMS[2]:]
    rw2_t, rw2_b = rw2[:DIMS[1]], rw2[DIMS[1]:]
    rw1_t, rw1_b = rw1[:DIMS[0]], rw1[DIMS[0]:]
    # first encoder Linear, zero-padded so it consumes the [x | t | 0] input slab exactly
    w1p = jnp.pad(w1, ((0, XT_W - IN_DIM), (0, 0)))

    # shared-LHS fusions: producer weight + the skip weight its output feeds later
    wk32 = jnp.concatenate(
        [pad128(w1p),
         pad128(jnp.concatenate([w2, rw1_b], axis=1)),      # 80  -> 128
         pad128(rw1_t)], axis=1)
    wk64 = jnp.concatenate(
        [pad128(jnp.concatenate([w3, rw2_b], axis=1)),      # 160 -> 256
         pad128(rw2_t)], axis=1)
    wk128 = jnp.concatenate(
        [pad128(jnp.concatenate([w4, rw3_b], axis=1)),      # 320 -> 384
         pad128(rw3_t)], axis=1)
    dw_pack = jnp.concatenate(
        [pad128(d) for d in (dw1, dw2, dw3, dw4, dw5, dw6, dw7)], axis=1)
    wk256 = jnp.concatenate([w_emb, dw_pack, rw4], axis=1)

    gfp = w_gfp * (2.0 * jnp.pi)
    gfp256 = jnp.concatenate([gfp, gfp], axis=1)
    phase256 = jnp.concatenate([jnp.zeros_like(gfp), jnp.full_like(gfp, jnp.pi / 2)], axis=1)

    vec = jnp.concatenate(
        [gfp256, phase256, b_emb]
        + [pad128(v) for v in (db1, db2, db3, db4, db5, db6, db7)]
        + [pad128(v) for v in (g1, g2, g3, g4, rg4, rg3, rg2)]
        + [pad128(v) for v in (be1, be2, be3, be4, rbe4, rbe3, rbe2)]
        + [pad128(rb1)], axis=1)

    assert wk32.shape == (32, 384), wk32.shape
    assert wk64.shape == (64, 384), wk64.shape
    assert wk128.shape == (128, 512), wk128.shape
    assert wk256.shape == (256, 1408), wk256.shape
    assert vec.shape == (1, VEC_W), vec.shape
    return wk32, wk64, wk128, wk256, vec


def scorenet_forward(x, t, packed):
    wk32, wk64, wk128, wk256, vec = packed
    B, in_dim = x.shape
    xt = jnp.concatenate(
        [x, t.reshape(B, 1), jnp.zeros((B, XT_W - in_dim - 1), jnp.float32)], axis=1)

    vmem = pl.BlockSpec(memory_space=pltpu.MemorySpace.VMEM)
    mm = [(256, 256), (256, DW_W), (32, 32), (32, 80), (64, 160), (128, 320),
          (256, 128), (128, 64), (64, 32), (32, 16)]
    flops = 2 * B * sum(k * n for k, n in mm)
    bytes_accessed = 4 * (xt.size + wk32.size + wk64.size + wk128.size
                          + wk256.size + vec.size + B * in_dim)
    transcendentals = B * (EMBED_DIM + EMBED_DIM + 2 * sum(OUTS) + 2)

    return pl.pallas_call(
        scorenet_kernel,
        out_shape=jax.ShapeDtypeStruct((B, in_dim), jnp.float32),
        in_specs=[vmem] * 6,
        out_specs=vmem,
        cost_estimate=pl.CostEstimate(flops=flops, transcendentals=transcendentals,
                                      bytes_accessed=bytes_accessed),
    )(xt, wk32, wk64, wk128, wk256, vec)


# --------------------- deterministic parameter construction ---------------------
def make_params(key):
    keys = iter(jax.random.split(key, 64))

    def lin_w(fan_in, fan_out):
        return (jax.random.normal(next(keys), (fan_in, fan_out), jnp.float32)
                / jnp.sqrt(jnp.float32(fan_in)))

    def dense_block(embed_dim, out_dim):
        dw = lin_w(embed_dim, out_dim)
        db = jax.random.normal(next(keys), (1, out_dim), jnp.float32) * 0.01
        g = jnp.ones((1, out_dim), jnp.float32)
        b = jnp.zeros((1, out_dim), jnp.float32)
        return dw, db, g, b

    half = EMBED_DIM // 2
    params = []
    params.append(jax.random.normal(next(keys), (1, half), jnp.float32) * 30.0)  # GFP W
    params.append(lin_w(EMBED_DIM, EMBED_DIM))                                   # embed Linear
    params.append(jax.random.normal(next(keys), (1, EMBED_DIM), jnp.float32) * 0.01)
    enc_in = (IN_DIM, DIMS[0], DIMS[1], DIMS[2])
    for i, d in enumerate(DIMS):
        params.append(lin_w(enc_in[i], d))
        params.extend(dense_block(EMBED_DIM, d))
    params.append(lin_w(DIMS[3], DIMS[2]))
    params.extend(dense_block(EMBED_DIM, DIMS[2]))
    params.append(lin_w(DIMS[2] + DIMS[2], DIMS[1]))
    params.extend(dense_block(EMBED_DIM, DIMS[1]))
    params.append(lin_w(DIMS[1] + DIMS[1], DIMS[0]))
    params.extend(dense_block(EMBED_DIM, DIMS[0]))
    params.append(lin_w(DIMS[0] + DIMS[0], IN_DIM))
    params.append(jax.random.normal(next(keys), (1, IN_DIM), jnp.float32) * 0.01)
    return params


# --------------------------- plain-JAX reference ---------------------------
def _batchnorm_ref(v, gamma, beta):
    mu = jnp.mean(v, axis=0, keepdims=True)
    var = jnp.mean((v - mu) ** 2, axis=0, keepdims=True)
    return (v - mu) * jax.lax.rsqrt(var + EPS) * gamma + beta


def scorenet_ref(x, t, params):
    (w_gfp, w_emb, b_emb,
     w1, dw1, db1, g1, be1,
     w2, dw2, db2, g2, be2,
     w3, dw3, db3, g3, be3,
     w4, dw4, db4, g4, be4,
     rw4, dw5, db5, rg4, rbe4,
     rw3, dw6, db6, rg3, rbe3,
     rw2, dw7, db7, rg2, rbe2,
     rw1, rb1) = params
    t2 = t.reshape(-1, 1)
    proj = t2 * w_gfp * (2.0 * jnp.pi)
    embed = _swish(jnp.concatenate([jnp.sin(proj), jnp.cos(proj)], -1) @ w_emb + b_emb)

    def block(h_in, w, dw, db, g, be):
        h = h_in @ w + embed @ dw + db
        return _swish(_batchnorm_ref(h, g, be))

    h1 = block(x, w1, dw1, db1, g1, be1)
    h2 = block(h1, w2, dw2, db2, g2, be2)
    h3 = block(h2, w3, dw3, db3, g3, be3)
    h4 = block(h3, w4, dw4, db4, g4, be4)
    h = block(h4, rw4, dw5, db5, rg4, rbe4)
    h = block(jnp.concatenate([h, h3], 1), rw3, dw6, db6, rg3, rbe3)
    h = block(jnp.concatenate([h, h2], 1), rw2, dw7, db7, rg2, rbe2)
    h = jnp.concatenate([h, h1], 1) @ rw1 + rb1
    std = jnp.sqrt((jnp.exp(2.0 * t2 * jnp.log(SIGMA)) - 1.0) / (2.0 * jnp.log(SIGMA)))
    return h / std


if __name__ == "__main__":
    key = jax.random.PRNGKey(0)
    k_x, k_t, k_p = jax.random.split(key, 3)

    B = 8
    x = jax.random.normal(k_x, (B, IN_DIM), jnp.float32)
    t = jax.random.uniform(k_t, (B,), jnp.float32, minval=1e-3, maxval=1.0)
    params = make_params(k_p)
    packed = pack_params(params)

    out = scorenet_forward(x, t, packed)
    out = jax.block_until_ready(out)

    ref = scorenet_ref(x, t, params)
    assert out.shape == (B, IN_DIM)
    assert jnp.allclose(out, ref, atol=5e-4, rtol=5e-4), float(jnp.max(jnp.abs(out - ref)))
    print("KERNEL_OK")
</pallas_src>

<mosaic_0001>
module attributes {stable_mosaic.version = 11 : i64} {
  func.func @scorenet_kernel(%arg0: memref<8x32xf32, #tpu.memory_space<vmem>>, %arg1: memref<32x384xf32, #tpu.memory_space<vmem>>, %arg2: memref<64x384xf32, #tpu.memory_space<vmem>>, %arg3: memref<128x512xf32, #tpu.memory_space<vmem>>, %arg4: memref<256x1408xf32, #tpu.memory_space<vmem>>, %arg5: memref<1x3968xf32, #tpu.memory_space<vmem>>, %arg6: memref<8x16xf32, #tpu.memory_space<vmem>>) attributes {dimension_semantics = [], scalar_prefetch = 0 : i64, scratch_operands = 0 : i64, tpu.core_type = #tpu.core_type<tc>} {
    %c0 = arith.constant 0 : index
    %c0_0 = arith.constant 0 : index
    %0 = vector.load %arg0[%c0, %c0_0] : memref<8x32xf32, #tpu.memory_space<vmem>>, vector<8x32xf32>
    %1 = vector.extract_strided_slice %0 {offsets = [0, 16], sizes = [8, 1], strides = [1, 1]} : vector<8x32xf32> to vector<8x1xf32>
    %c0_1 = arith.constant 0 : index
    %c0_2 = arith.constant 0 : index
    %2 = vector.load %arg5[%c0_1, %c0_2] : memref<1x3968xf32, #tpu.memory_space<vmem>>, vector<1x256xf32>
    %3 = vector.broadcast %1 : vector<8x1xf32> to vector<8x256xf32>
    %4 = vector.broadcast %2 : vector<1x256xf32> to vector<8x256xf32>
    %5 = arith.mulf %3, %4 : vector<8x256xf32>
    %c0_3 = arith.constant 0 : index
    %c256 = arith.constant 256 : index
    %6 = vector.load %arg5[%c0_3, %c256] : memref<1x3968xf32, #tpu.memory_space<vmem>>, vector<1x256xf32>
    %7 = vector.broadcast %6 : vector<1x256xf32> to vector<8x256xf32>
    %8 = arith.addf %5, %7 : vector<8x256xf32>
    %9 = math.sin %8 : vector<8x256xf32>
    %c0_4 = arith.constant 0 : index
    %c0_5 = arith.constant 0 : index
    %10 = vector.load %arg4[%c0_4, %c0_5] : memref<256x1408xf32, #tpu.memory_space<vmem>>, vector<256x256xf32>
    %cst = arith.constant dense<0.000000e+00> : vector<8x256xf32>
    %11 = tpu.matmul %9, %10, %cst {dimension_numbers = #tpu.dot_dimension_numbers<[1], [0], [0], [1], [0, 0, 1, 1], [], []>} : vector<8x256xf32>, vector<256x256xf32>, vector<8x256xf32> -> vector<8x256xf32>
    %c0_6 = arith.constant 0 : index
    %c512 = arith.constant 512 : index
    %12 = vector.load %arg5[%c0_6, %c512] : memref<1x3968xf32, #tpu.memory_space<vmem>>, vector<1x256xf32>
    %13 = vector.broadcast %12 : vector<1x256xf32> to vector<8x256xf32>
    %14 = arith.addf %11, %13 : vector<8x256xf32>
    %15 = arith.negf %14 : vector<8x256xf32>
    %16 = math.exp %15 : vector<8x256xf32>
    %cst_7 = arith.constant 1.000000e+00 : f32
    %17 = vector.broadcast %cst_7 : f32 to vector<8x256xf32>
    %18 = arith.addf %17, %16 : vector<8x256xf32>
    %19 = arith.divf %17, %18 : vector<8x256xf32>
    %20 = arith.mulf %14, %19 : vector<8x256xf32>
    %c0_8 = arith.constant 0 : index
    %c256_9 = arith.constant 256 : index
    %21 = vector.load %arg4[%c0_8, %c256_9] : memref<256x1408xf32, #tpu.memory_space<vmem>>, vector<256x1024xf32>
    %cst_10 = arith.constant dense<0.000000e+00> : vector<8x1024xf32>
    %22 = tpu.matmul %20, %21, %cst_10 {dimension_numbers = #tpu.dot_dimension_numbers<[1], [0], [0], [1], [0, 0, 1, 1], [], []>} : vector<8x256xf32>, vector<256x1024xf32>, vector<8x1024xf32> -> vector<8x1024xf32>
    %c0_11 = arith.constant 0 : index
    %c768 = arith.constant 768 : index
    %23 = vector.load %arg5[%c0_11, %c768] : memref<1x3968xf32, #tpu.memory_space<vmem>>, vector<1x1024xf32>
    %24 = vector.broadcast %23 : vector<1x1024xf32> to vector<8x1024xf32>
    %25 = arith.addf %22, %24 : vector<8x1024xf32>
    %c0_12 = arith.constant 0 : index
    %c0_13 = arith.constant 0 : index
    %26 = vector.load %arg1[%c0_12, %c0_13] : memref<32x384xf32, #tpu.memory_space<vmem>>, vector<32x32xf32>
    %cst_14 = arith.constant dense<0.000000e+00> : vector<8x32xf32>
    %27 = tpu.matmul %0, %26, %cst_14 {dimension_numbers = #tpu.dot_dimension_numbers<[1], [0], [0], [1], [0, 0, 1, 1], [], []>} : vector<8x32xf32>, vector<32x32xf32>, vector<8x32xf32> -> vector<8x32xf32>
    %28 = vector.extract_strided_slice %25 {offsets = [0, 0], sizes = [8, 32], strides = [1, 1]} : vector<8x1024xf32> to vector<8x32xf32>
    %29 = arith.addf %27, %28 : vector<8x32xf32>
    %cst_15 = arith.constant dense<0.000000e+00> : vector<32xf32>
    %30 = vector.multi_reduction <add>, %29, %cst_15 [0] : vector<8x32xf32> to vector<32xf32>
    %31 = vector.shape_cast %30 : vector<32xf32> to vector<1x32xf32>
    %cst_16 = arith.constant 8.000000e+00 : f32
    %32 = vector.broadcast %cst_16 : f32 to vector<1x32xf32>
    %33 = arith.divf %31, %32 : vector<1x32xf32>
    %34 = arith.mulf %29, %29 : vector<8x32xf32>
    %cst_17 = arith.constant dense<0.000000e+00> : vector<32xf32>
    %35 = vector.multi_reduction <add>, %34, %cst_17 [0] : vector<8x32xf32> to vector<32xf32>
    %36 = vector.shape_cast %35 : vector<32xf32> to vector<1x32xf32>
    %cst_18 = arith.constant 8.000000e+00 : f32
    %37 = vector.broadcast %cst_18 : f32 to vector<1x32xf32>
    %38 = arith.divf %36, %37 : vector<1x32xf32>
    %39 = arith.mulf %33, %33 : vector<1x32xf32>
    %40 = arith.subf %38, %39 : vector<1x32xf32>
    %cst_19 = arith.constant 0.000000e+00 : f32
    %41 = vector.broadcast %cst_19 : f32 to vector<1x32xf32>
    %42 = arith.maximumf %40, %41 : vector<1x32xf32>
    %c0_20 = arith.constant 0 : index
    %c1792 = arith.constant 1792 : index
    %43 = vector.load %arg5[%c0_20, %c1792] : memref<1x3968xf32, #tpu.memory_space<vmem>>, vector<1x32xf32>
    %c0_21 = arith.constant 0 : index
    %c2816 = arith.constant 2816 : index
    %44 = vector.load %arg5[%c0_21, %c2816] : memref<1x3968xf32, #tpu.memory_space<vmem>>, vector<1x32xf32>
    %45 = vector.broadcast %33 : vector<1x32xf32> to vector<8x32xf32>
    %46 = arith.subf %29, %45 : vector<8x32xf32>
    %cst_22 = arith.constant 9.99999974E-6 : f32
    %47 = vector.broadcast %cst_22 : f32 to vector<1x32xf32>
    %48 = arith.addf %42, %47 : vector<1x32xf32>
    %49 = math.rsqrt %48 : vector<1x32xf32>
    %50 = vector.broadcast %49 : vector<1x32xf32> to vector<8x32xf32>
    %51 = arith.mulf %46, %50 : vector<8x32xf32>
    %52 = vector.broadcast %43 : vector<1x32xf32> to vector<8x32xf32>
    %53 = arith.mulf %51, %52 : vector<8x32xf32>
    %54 = vector.broadcast %44 : vector<1x32xf32> to vector<8x32xf32>
    %55 = arith.addf %53, %54 : vector<8x32xf32>
    %56 = arith.negf %55 : vector<8x32xf32>
    %57 = math.exp %56 : vector<8x32xf32>
    %cst_23 = arith.constant 1.000000e+00 : f32
    %58 = vector.broadcast %cst_23 : f32 to vector<8x32xf32>
    %59 = arith.addf %58, %57 : vector<8x32xf32>
    %60 = arith.divf %58, %59 : vector<8x32xf32>
    %61 = arith.mulf %55, %60 : vector<8x32xf32>
    %c0_24 = arith.constant 0 : index
    %c128 = arith.constant 128 : index
    %62 = vector.load %arg1[%c0_24, %c128] : memref<32x384xf32, #tpu.memory_space<vmem>>, vector<32x80xf32>
    %cst_25 = arith.constant dense<0.000000e+00> : vector<8x80xf32>
    %63 = tpu.matmul %61, %62, %cst_25 {dimension_numbers = #tpu.dot_dimension_numbers<[1], [0], [0], [1], [0, 0, 1, 1], [], []>} : vector<8x32xf32>, vector<32x80xf32>, vector<8x80xf32> -> vector<8x80xf32>
    %64 = vector.extract_strided_slice %63 {offsets = [0, 0], sizes = [8, 64], strides = [1, 1]} : vector<8x80xf32> to vector<8x64xf32>
    %65 = vector.extract_strided_slice %25 {offsets = [0, 128], sizes = [8, 64], strides = [1, 1]} : vector<8x1024xf32> to vector<8x64xf32>
    %66 = arith.addf %64, %65 : vector<8x64xf32>
    %cst_26 = arith.constant dense<0.000000e+00> : vector<64xf32>
    %67 = vector.multi_reduction <add>, %66, %cst_26 [0] : vector<8x64xf32> to vector<64xf32>
    %68 = vector.shape_cast %67 : vector<64xf32> to vector<1x64xf32>
    %cst_27 = arith.constant 8.000000e+00 : f32
    %69 = vector.broadcast %cst_27 : f32 to vector<1x64xf32>
    %70 = arith.divf %68, %69 : vector<1x64xf32>
    %71 = arith.mulf %66, %66 : vector<8x64xf32>
    %cst_28 = arith.constant dense<0.000000e+00> : vector<64xf32>
    %72 = vector.multi_reduction <add>, %71, %cst_28 [0] : vector<8x64xf32> to vector<64xf32>
    %73 = vector.shape_cast %72 : vector<64xf32> to vector<1x64xf32>
    %cst_29 = arith.constant 8.000000e+00 : f32
    %74 = vector.broadcast %cst_29 : f32 to vector<1x64xf32>
    %75 = arith.divf %73, %74 : vector<1x64xf32>
    %76 = arith.mulf %70, %70 : vector<1x64xf32>
    %77 = arith.subf %75, %76 : vector<1x64xf32>
    %cst_30 = arith.constant 0.000000e+00 : f32
    %78 = vector.broadcast %cst_30 : f32 to vector<1x64xf32>
    %79 = arith.maximumf %77, %78 : vector<1x64xf32>
    %c0_31 = arith.constant 0 : index
    %c1920 = arith.constant 1920 : index
    %80 = vector.load %arg5[%c0_31, %c1920] : memref<1x3968xf32, #tpu.memory_space<vmem>>, vector<1x64xf32>
    %c0_32 = arith.constant 0 : index
    %c2944 = arith.constant 2944 : index
    %81 = vector.load %arg5[%c0_32, %c2944] : memref<1x3968xf32, #tpu.memory_space<vmem>>, vector<1x64xf32>
    %82 = vector.broadcast %70 : vector<1x64xf32> to vector<8x64xf32>
    %83 = arith.subf %66, %82 : vector<8x64xf32>
    %cst_33 = arith.constant 9.99999974E-6 : f32
    %84 = vector.broadcast %cst_33 : f32 to vector<1x64xf32>
    %85 = arith.addf %79, %84 : vector<1x64xf32>
    %86 = math.rsqrt %85 : vector<1x64xf32>
    %87 = vector.broadcast %86 : vector<1x64xf32> to vector<8x64xf32>
    %88 = arith.mulf %83, %87 : vector<8x64xf32>
    %89 = vector.broadcast %80 : vector<1x64xf32> to vector<8x64xf32>
    %90 = arith.mulf %88, %89 : vector<8x64xf32>
    %91 = vector.broadcast %81 : vector<1x64xf32> to vector<8x64xf32>
    %92 = arith.addf %90, %91 : vector<8x64xf32>
    %93 = arith.negf %92 : vector<8x64xf32>
    %94 = math.exp %93 : vector<8x64xf32>
    %cst_34 = arith.constant 1.000000e+00 : f32
    %95 = vector.broadcast %cst_34 : f32 to vector<8x64xf32>
    %96 = arith.addf %95, %94 : vector<8x64xf32>
    %97 = arith.divf %95, %96 : vector<8x64xf32>
    %98 = arith.mulf %92, %97 : vector<8x64xf32>
    %99 = vector.extract_strided_slice %63 {offsets = [0, 64], sizes = [8, 16], strides = [1, 1]} : vector<8x80xf32> to vector<8x16xf32>
    %c0_35 = arith.constant 0 : index
    %c0_36 = arith.constant 0 : index
    %100 = vector.load %arg2[%c0_35, %c0_36] : memref<64x384xf32, #tpu.memory_space<vmem>>, vector<64x160xf32>
    %cst_37 = arith.constant dense<0.000000e+00> : vector<8x160xf32>
    %101 = tpu.matmul %98, %100, %cst_37 {dimension_numbers = #tpu.dot_dimension_numbers<[1], [0], [0], [1], [0, 0, 1, 1], [], []>} : vector<8x64xf32>, vector<64x160xf32>, vector<8x160xf32> -> vector<8x160xf32>
    %102 = vector.extract_strided_slice %101 {offsets = [0, 0], sizes = [8, 128], strides = [1, 1]} : vector<8x160xf32> to vector<8x128xf32>
    %103 = vector.extract_strided_slice %25 {offsets = [0, 256], sizes = [8, 128], strides = [1, 1]} : vector<8x1024xf32> to vector<8x128xf32>
    %104 = arith.addf %102, %103 : vector<8x128xf32>
    %cst_38 = arith.constant dense<0.000000e+00> : vector<128xf32>
    %105 = vector.multi_reduction <add>, %104, %cst_38 [0] : vector<8x128xf32> to vector<128xf32>
    %106 = vector.shape_cast %105 : vector<128xf32> to vector<1x128xf32>
    %cst_39 = arith.constant 8.000000e+00 : f32
    %107 = vector.broadcast %cst_39 : f32 to vector<1x128xf32>
    %108 = arith.divf %106, %107 : vector<1x128xf32>
    %109 = arith.mulf %104, %104 : vector<8x128xf32>
    %cst_40 = arith.constant dense<0.000000e+00> : vector<128xf32>
    %110 = vector.multi_reduction <add>, %109, %cst_40 [0] : vector<8x128xf32> to vector<128xf32>
    %111 = vector.shape_cast %110 : vector<128xf32> to vector<1x128xf32>
    %cst_41 = arith.constant 8.000000e+00 : f32
    %112 = vector.broadcast %cst_41 : f32 to vector<1x128xf32>
    %113 = arith.divf %111, %112 : vector<1x128xf32>
    %114 = arith.mulf %108, %108 : vector<1x128xf32>
    %115 = arith.subf %113, %114 : vector<1x128xf32>
    %cst_42 = arith.constant 0.000000e+00 : f32
    %116 = vector.broadcast %cst_42 : f32 to vector<1x128xf32>
    %117 = arith.maximumf %115, %116 : vector<1x128xf32>
    %c0_43 = arith.constant 0 : index
    %c2048 = arith.constant 2048 : index
    %118 = vector.load %arg5[%c0_43, %c2048] : memref<1x3968xf32, #tpu.memory_space<vmem>>, vector<1x128xf32>
    %c0_44 = arith.constant 0 : index
    %c3072 = arith.constant 3072 : index
    %119 = vector.load %arg5[%c0_44, %c3072] : memref<1x3968xf32, #tpu.memory_space<vmem>>, vector<1x128xf32>
    %120 = vector.broadcast %108 : vector<1x128xf32> to vector<8x128xf32>
    %121 = arith.subf %104, %120 : vector<8x128xf32>
    %cst_45 = arith.constant 9.99999974E-6 : f32
    %122 = vector.broadcast %cst_45 : f32 to vector<1x128xf32>
    %123 = arith.addf %117, %122 : vector<1x128xf32>
    %124 = math.rsqrt %123 : vector<1x128xf32>
    %125 = vector.broadcast %124 : vector<1x128xf32> to vector<8x128xf32>
    %126 = arith.mulf %121, %125 : vector<8x128xf32>
    %127 = vector.broadcast %118 : vector<1x128xf32> to vector<8x128xf32>
    %128 = arith.mulf %126, %127 : vector<8x128xf32>
    %129 = vector.broadcast %119 : vector<1x128xf32> to vector<8x128xf32>
    %130 = arith.addf %128, %129 : vector<8x128xf32>
    %131 = arith.negf %130 : vector<8x128xf32>
    %132 = math.exp %131 : vector<8x128xf32>
    %cst_46 = arith.constant 1.000000e+00 : f32
    %133 = vector.broadcast %cst_46 : f32 to vector<8x128xf32>
    %134 = arith.addf %133, %132 : vector<8x128xf32>
    %135 = arith.divf %133, %134 : vector<8x128xf32>
    %136 = arith.mulf %130, %135 : vector<8x128xf32>
    %137 = vector.extract_strided_slice %101 {offsets = [0, 128], sizes = [8, 32], strides = [1, 1]} : vector<8x160xf32> to vector<8x32xf32>
    %c0_47 = arith.constant 0 : index
    %c0_48 = arith.constant 0 : index
    %138 = vector.load %arg3[%c0_47, %c0_48] : memref<128x512xf32, #tpu.memory_space<vmem>>, vector<128x320xf32>
    %cst_49 = arith.constant dense<0.000000e+00> : vector<8x320xf32>
    %139 = tpu.matmul %136, %138, %cst_49 {dimension_numbers = #tpu.dot_dimension_numbers<[1], [0], [0], [1], [0, 0, 1, 1], [], []>} : vector<8x128xf32>, vector<128x320xf32>, vector<8x320xf32> -> vector<8x320xf32>
    %140 = vector.extract_strided_slice %139 {offsets = [0, 0], sizes = [8, 256], strides = [1, 1]} : vector<8x320xf32> to vector<8x256xf32>
    %141 = vector.extract_strided_slice %25 {offsets = [0, 384], sizes = [8, 256], strides = [1, 1]} : vector<8x1024xf32> to vector<8x256xf32>
    %142 = arith.addf %140, %141 : vector<8x256xf32>
    %cst_50 = arith.constant dense<0.000000e+00> : vector<256xf32>
    %143 = vector.multi_reduction <add>, %142, %cst_50 [0] : vector<8x256xf32> to vector<256xf32>
    %144 = vector.shape_cast %143 : vector<256xf32> to vector<1x256xf32>
    %cst_51 = arith.constant 8.000000e+00 : f32
    %145 = vector.broadcast %cst_51 : f32 to vector<1x256xf32>
    %146 = arith.divf %144, %145 : vector<1x256xf32>
    %147 = arith.mulf %142, %142 : vector<8x256xf32>
    %cst_52 = arith.constant dense<0.000000e+00> : vector<256xf32>
    %148 = vector.multi_reduction <add>, %147, %cst_52 [0] : vector<8x256xf32> to vector<256xf32>
    %149 = vector.shape_cast %148 : vector<256xf32> to vector<1x256xf32>
    %cst_53 = arith.constant 8.000000e+00 : f32
    %150 = vector.broadcast %cst_53 : f32 to vector<1x256xf32>
    %151 = arith.divf %149, %150 : vector<1x256xf32>
    %152 = arith.mulf %146, %146 : vector<1x256xf32>
    %153 = arith.subf %151, %152 : vector<1x256xf32>
    %cst_54 = arith.constant 0.000000e+00 : f32
    %154 = vector.broadcast %cst_54 : f32 to vector<1x256xf32>
    %155 = arith.maximumf %153, %154 : vector<1x256xf32>
    %c0_55 = arith.constant 0 : index
    %c2176 = arith.constant 2176 : index
    %156 = vector.load %arg5[%c0_55, %c2176] : memref<1x3968xf32, #tpu.memory_space<vmem>>, vector<1x256xf32>
    %c0_56 = arith.constant 0 : index
    %c3200 = arith.constant 3200 : index
    %157 = vector.load %arg5[%c0_56, %c3200] : memref<1x3968xf32, #tpu.memory_space<vmem>>, vector<1x256xf32>
    %158 = vector.broadcast %146 : vector<1x256xf32> to vector<8x256xf32>
    %159 = arith.subf %142, %158 : vector<8x256xf32>
    %cst_57 = arith.constant 9.99999974E-6 : f32
    %160 = vector.broadcast %cst_57 : f32 to vector<1x256xf32>
    %161 = arith.addf %155, %160 : vector<1x256xf32>
    %162 = math.rsqrt %161 : vector<1x256xf32>
    %163 = vector.broadcast %162 : vector<1x256xf32> to vector<8x256xf32>
    %164 = arith.mulf %159, %163 : vector<8x256xf32>
    %165 = vector.broadcast %156 : vector<1x256xf32> to vector<8x256xf32>
    %166 = arith.mulf %164, %165 : vector<8x256xf32>
    %167 = vector.broadcast %157 : vector<1x256xf32> to vector<8x256xf32>
    %168 = arith.addf %166, %167 : vector<8x256xf32>
    %169 = arith.negf %168 : vector<8x256xf32>
    %170 = math.exp %169 : vector<8x256xf32>
    %cst_58 = arith.constant 1.000000e+00 : f32
    %171 = vector.broadcast %cst_58 : f32 to vector<8x256xf32>
    %172 = arith.addf %171, %170 : vector<8x256xf32>
    %173 = arith.divf %171, %172 : vector<8x256xf32>
    %174 = arith.mulf %168, %173 : vector<8x256xf32>
    %175 = vector.extract_strided_slice %139 {offsets = [0, 256], sizes = [8, 64], strides = [1, 1]} : vector<8x320xf32> to vector<8x64xf32>
    %c0_59 = arith.constant 0 : index
    %c1280 = arith.constant 1280 : index
    %176 = vector.load %arg4[%c0_59, %c1280] : memref<256x1408xf32, #tpu.memory_space<vmem>>, vector<256x128xf32>
    %cst_60 = arith.constant dense<0.000000e+00> : vector<8x128xf32>
    %177 = tpu.matmul %174, %176, %cst_60 {dimension_numbers = #tpu.dot_dimension_numbers<[1], [0], [0], [1], [0, 0, 1, 1], [], []>} : vector<8x256xf32>, vector<256x128xf32>, vector<8x128xf32> -> vector<8x128xf32>
    %178 = vector.extract_strided_slice %25 {offsets = [0, 640], sizes = [8, 128], strides = [1, 1]} : vector<8x1024xf32> to vector<8x128xf32>
    %179 = arith.addf %177, %178 : vector<8x128xf32>
    %cst_61 = arith.constant dense<0.000000e+00> : vector<128xf32>
    %180 = vector.multi_reduction <add>, %179, %cst_61 [0] : vector<8x128xf32> to vector<128xf32>
    %181 = vector.shape_cast %180 : vector<128xf32> to vector<1x128xf32>
    %cst_62 = arith.constant 8.000000e+00 : f32
    %182 = vector.broadcast %cst_62 : f32 to vector<1x128xf32>
    %183 = arith.divf %181, %182 : vector<1x128xf32>
    %184 = arith.mulf %179, %179 : vector<8x128xf32>
    %cst_63 = arith.constant dense<0.000000e+00> : vector<128xf32>
    %185 = vector.multi_reduction <add>, %184, %cst_63 [0] : vector<8x128xf32> to vector<128xf32>
    %186 = vector.shape_cast %185 : vector<128xf32> to vector<1x128xf32>
    %cst_64 = arith.constant 8.000000e+00 : f32
    %187 = vector.broadcast %cst_64 : f32 to vector<1x128xf32>
    %188 = arith.divf %186, %187 : vector<1x128xf32>
    %189 = arith.mulf %183, %183 : vector<1x128xf32>
    %190 = arith.subf %188, %189 : vector<1x128xf32>
    %cst_65 = arith.constant 0.000000e+00 : f32
    %191 = vector.broadcast %cst_65 : f32 to vector<1x128xf32>
    %192 = arith.maximumf %190, %191 : vector<1x128xf32>
    %c0_66 = arith.constant 0 : index
    %c2432 = arith.constant 2432 : index
    %193 = vector.load %arg5[%c0_66, %c2432] : memref<1x3968xf32, #tpu.memory_space<vmem>>, vector<1x128xf32>
    %c0_67 = arith.constant 0 : index
    %c3456 = arith.constant 3456 : index
    %194 = vector.load %arg5[%c0_67, %c3456] : memref<1x3968xf32, #tpu.memory_space<vmem>>, vector<1x128xf32>
    %195 = vector.broadcast %183 : vector<1x128xf32> to vector<8x128xf32>
    %196 = arith.subf %179, %195 : vector<8x128xf32>
    %cst_68 = arith.constant 9.99999974E-6 : f32
    %197 = vector.broadcast %cst_68 : f32 to vector<1x128xf32>
    %198 = arith.addf %192, %197 : vector<1x128xf32>
    %199 = math.rsqrt %198 : vector<1x128xf32>
    %200 = vector.broadcast %199 : vector<1x128xf32> to vector<8x128xf32>
    %201 = arith.mulf %196, %200 : vector<8x128xf32>
    %202 = vector.broadcast %193 : vector<1x128xf32> to vector<8x128xf32>
    %203 = arith.mulf %201, %202 : vector<8x128xf32>
    %204 = vector.broadcast %194 : vector<1x128xf32> to vector<8x128xf32>
    %205 = arith.addf %203, %204 : vector<8x128xf32>
    %206 = arith.negf %205 : vector<8x128xf32>
    %207 = math.exp %206 : vector<8x128xf32>
    %cst_69 = arith.constant 1.000000e+00 : f32
    %208 = vector.broadcast %cst_69 : f32 to vector<8x128xf32>
    %209 = arith.addf %208, %207 : vector<8x128xf32>
    %210 = arith.divf %208, %209 : vector<8x128xf32>
    %211 = arith.mulf %205, %210 : vector<8x128xf32>
    %c0_70 = arith.constant 0 : index
    %c384 = arith.constant 384 : index
    %212 = vector.load %arg3[%c0_70, %c384] : memref<128x512xf32, #tpu.memory_space<vmem>>, vector<128x64xf32>
    %cst_71 = arith.constant dense<0.000000e+00> : vector<8x64xf32>
    %213 = tpu.matmul %211, %212, %cst_71 {dimension_numbers = #tpu.dot_dimension_numbers<[1], [0], [0], [1], [0, 0, 1, 1], [], []>} : vector<8x128xf32>, vector<128x64xf32>, vector<8x64xf32> -> vector<8x64xf32>
    %214 = arith.addf %213, %175 : vector<8x64xf32>
    %215 = vector.extract_strided_slice %25 {offsets = [0, 768], sizes = [8, 64], strides = [1, 1]} : vector<8x1024xf32> to vector<8x64xf32>
    %216 = arith.addf %214, %215 : vector<8x64xf32>
    %cst_72 = arith.constant dense<0.000000e+00> : vector<64xf32>
    %217 = vector.multi_reduction <add>, %216, %cst_72 [0] : vector<8x64xf32> to vector<64xf32>
    %218 = vector.shape_cast %217 : vector<64xf32> to vector<1x64xf32>
    %cst_73 = arith.constant 8.000000e+00 : f32
    %219 = vector.broadcast %cst_73 : f32 to vector<1x64xf32>
    %220 = arith.divf %218, %219 : vector<1x64xf32>
    %221 = arith.mulf %216, %216 : vector<8x64xf32>
    %cst_74 = arith.constant dense<0.000000e+00> : vector<64xf32>
    %222 = vector.multi_reduction <add>, %221, %cst_74 [0] : vector<8x64xf32> to vector<64xf32>
    %223 = vector.shape_cast %222 : vector<64xf32> to vector<1x64xf32>
    %cst_75 = arith.constant 8.000000e+00 : f32
    %224 = vector.broadcast %cst_75 : f32 to vector<1x64xf32>
    %225 = arith.divf %223, %224 : vector<1x64xf32>
    %226 = arith.mulf %220, %220 : vector<1x64xf32>
    %227 = arith.subf %225, %226 : vector<1x64xf32>
    %cst_76 = arith.constant 0.000000e+00 : f32
    %228 = vector.broadcast %cst_76 : f32 to vector<1x64xf32>
    %229 = arith.maximumf %227, %228 : vector<1x64xf32>
    %c0_77 = arith.constant 0 : index
    %c2560 = arith.constant 2560 : index
    %230 = vector.load %arg5[%c0_77, %c2560] : memref<1x3968xf32, #tpu.memory_space<vmem>>, vector<1x64xf32>
    %c0_78 = arith.constant 0 : index
    %c3584 = arith.constant 3584 : index
    %231 = vector.load %arg5[%c0_78, %c3584] : memref<1x3968xf32, #tpu.memory_space<vmem>>, vector<1x64xf32>
    %232 = vector.broadcast %220 : vector<1x64xf32> to vector<8x64xf32>
    %233 = arith.subf %216, %232 : vector<8x64xf32>
    %cst_79 = arith.constant 9.99999974E-6 : f32
    %234 = vector.broadcast %cst_79 : f32 to vector<1x64xf32>
    %235 = arith.addf %229, %234 : vector<1x64xf32>
    %236 = math.rsqrt %235 : vector<1x64xf32>
    %237 = vector.broadcast %236 : vector<1x64xf32> to vector<8x64xf32>
    %238 = arith.mulf %233, %237 : vector<8x64xf32>
    %239 = vector.broadcast %230 : vector<1x64xf32> to vector<8x64xf32>
    %240 = arith.mulf %238, %239 : vector<8x64xf32>
    %241 = vector.broadcast %231 : vector<1x64xf32> to vector<8x64xf32>
    %242 = arith.addf %240, %241 : vector<8x64xf32>
    %243 = arith.negf %242 : vector<8x64xf32>
    %244 = math.exp %243 : vector<8x64xf32>
    %cst_80 = arith.constant 1.000000e+00 : f32
    %245 = vector.broadcast %cst_80 : f32 to vector<8x64xf32>
    %246 = arith.addf %245, %244 : vector<8x64xf32>
    %247 = arith.divf %245, %246 : vector<8x64xf32>
    %248 = arith.mulf %242, %247 : vector<8x64xf32>
    %c0_81 = arith.constant 0 : index
    %c256_82 = arith.constant 256 : index
    %249 = vector.load %arg2[%c0_81, %c256_82] : memref<64x384xf32, #tpu.memory_space<vmem>>, vector<64x32xf32>
    %cst_83 = arith.constant dense<0.000000e+00> : vector<8x32xf32>
    %250 = tpu.matmul %248, %249, %cst_83 {dimension_numbers = #tpu.dot_dimension_numbers<[1], [0], [0], [1], [0, 0, 1, 1], [], []>} : vector<8x64xf32>, vector<64x32xf32>, vector<8x32xf32> -> vector<8x32xf32>
    %251 = arith.addf %250, %137 : vector<8x32xf32>
    %252 = vector.extract_strided_slice %25 {offsets = [0, 896], sizes = [8, 32], strides = [1, 1]} : vector<8x1024xf32> to vector<8x32xf32>
    %253 = arith.addf %251, %252 : vector<8x32xf32>
    %cst_84 = arith.constant dense<0.000000e+00> : vector<32xf32>
    %254 = vector.multi_reduction <add>, %253, %cst_84 [0] : vector<8x32xf32> to vector<32xf32>
    %255 = vector.shape_cast %254 : vector<32xf32> to vector<1x32xf32>
    %cst_85 = arith.constant 8.000000e+00 : f32
    %256 = vector.broadcast %cst_85 : f32 to vector<1x32xf32>
    %257 = arith.divf %255, %256 : vector<1x32xf32>
    %258 = arith.mulf %253, %253 : vector<8x32xf32>
    %cst_86 = arith.constant dense<0.000000e+00> : vector<32xf32>
    %259 = vector.multi_reduction <add>, %258, %cst_86 [0] : vector<8x32xf32> to vector<32xf32>
    %260 = vector.shape_cast %259 : vector<32xf32> to vector<1x32xf32>
    %cst_87 = arith.constant 8.000000e+00 : f32
    %261 = vector.broadcast %cst_87 : f32 to vector<1x32xf32>
    %262 = arith.divf %260, %261 : vector<1x32xf32>
    %263 = arith.mulf %257, %257 : vector<1x32xf32>
    %264 = arith.subf %262, %263 : vector<1x32xf32>
    %cst_88 = arith.constant 0.000000e+00 : f32
    %265 = vector.broadcast %cst_88 : f32 to vector<1x32xf32>
    %266 = arith.maximumf %264, %265 : vector<1x32xf32>
    %c0_89 = arith.constant 0 : index
    %c2688 = arith.constant 2688 : index
    %267 = vector.load %arg5[%c0_89, %c2688] : memref<1x3968xf32, #tpu.memory_space<vmem>>, vector<1x32xf32>
    %c0_90 = arith.constant 0 : index
    %c3712 = arith.constant 3712 : index
    %268 = vector.load %arg5[%c0_90, %c3712] : memref<1x3968xf32, #tpu.memory_space<vmem>>, vector<1x32xf32>
    %269 = vector.broadcast %257 : vector<1x32xf32> to vector<8x32xf32>
    %270 = arith.subf %253, %269 : vector<8x32xf32>
    %cst_91 = arith.constant 9.99999974E-6 : f32
    %271 = vector.broadcast %cst_91 : f32 to vector<1x32xf32>
    %272 = arith.addf %266, %271 : vector<1x32xf32>
    %273 = math.rsqrt %272 : vector<1x32xf32>
    %274 = vector.broadcast %273 : vector<1x32xf32> to vector<8x32xf32>
    %275 = arith.mulf %270, %274 : vector<8x32xf32>
    %276 = vector.broadcast %267 : vector<1x32xf32> to vector<8x32xf32>
    %277 = arith.mulf %275, %276 : vector<8x32xf32>
    %278 = vector.broadcast %268 : vector<1x32xf32> to vector<8x32xf32>
    %279 = arith.addf %277, %278 : vector<8x32xf32>
    %280 = arith.negf %279 : vector<8x32xf32>
    %281 = math.exp %280 : vector<8x32xf32>
    %cst_92 = arith.constant 1.000000e+00 : f32
    %282 = vector.broadcast %cst_92 : f32 to vector<8x32xf32>
    %283 = arith.addf %282, %281 : vector<8x32xf32>
    %284 = arith.divf %282, %283 : vector<8x32xf32>
    %285 = arith.mulf %279, %284 : vector<8x32xf32>
    %c0_93 = arith.constant 0 : index
    %c256_94 = arith.constant 256 : index
    %286 = vector.load %arg1[%c0_93, %c256_94] : memref<32x384xf32, #tpu.memory_space<vmem>>, vector<32x16xf32>
    %cst_95 = arith.constant dense<0.000000e+00> : vector<8x16xf32>
    %287 = tpu.matmul %285, %286, %cst_95 {dimension_numbers = #tpu.dot_dimension_numbers<[1], [0], [0], [1], [0, 0, 1, 1], [], []>} : vector<8x32xf32>, vector<32x16xf32>, vector<8x16xf32> -> vector<8x16xf32>
    %288 = arith.addf %287, %99 : vector<8x16xf32>
    %c0_96 = arith.constant 0 : index
    %c3840 = arith.constant 3840 : index
    %289 = vector.load %arg5[%c0_96, %c3840] : memref<1x3968xf32, #tpu.memory_space<vmem>>, vector<1x16xf32>
    %290 = vector.broadcast %289 : vector<1x16xf32> to vector<8x16xf32>
    %291 = arith.addf %288, %290 : vector<8x16xf32>
    %cst_97 = arith.constant 2.500000e+01 : f32
    %292 = math.log %cst_97 : f32
    %cst_98 = arith.constant 2.000000e+00 : f32
    %293 = vector.broadcast %cst_98 : f32 to vector<8x1xf32>
    %294 = arith.mulf %293, %1 : vector<8x1xf32>
    %295 = vector.broadcast %292 : f32 to vector<8x1xf32>
    %296 = arith.mulf %294, %295 : vector<8x1xf32>
    %297 = math.exp %296 : vector<8x1xf32>
    %cst_99 = arith.constant 1.000000e+00 : f32
    %298 = vector.broadcast %cst_99 : f32 to vector<8x1xf32>
    %299 = arith.subf %297, %298 : vector<8x1xf32>
    %cst_100 = arith.constant 2.000000e+00 : f32
    %300 = arith.mulf %cst_100, %292 : f32
    %301 = vector.broadcast %300 : f32 to vector<8x1xf32>
    %302 = arith.divf %299, %301 : vector<8x1xf32>
    %303 = math.rsqrt %302 : vector<8x1xf32>
    %304 = vector.broadcast %303 : vector<8x1xf32> to vector<8x16xf32>
    %305 = arith.mulf %291, %304 : vector<8x16xf32>
    %c0_101 = arith.constant 0 : index
    %c0_102 = arith.constant 0 : index
    %306 = vector.load %arg6[%c0_101, %c0_102] : memref<8x16xf32, #tpu.memory_space<vmem>>, vector<8x16xf32>
    tpu.vector_store %arg6[%c0_101, %c0_102], %305 {strides = array<i32>} : memref<8x16xf32, #tpu.memory_space<vmem>>, vector<8x16xf32>,
    return
  }
}

</mosaic_0001>

<llo_original>
// kernel: tpu_custom_call.1
$region0: #{tpu_custom_call.1}
  #allocation0 [shape = 'u32[]', space=smem, size = 0x4, offset = 0x4, fixed_abs, tag = 'smem constant byte address 0x4 - core index']
  #allocation1 [shape = 'u32[72,128]{1,0:T(1,128)}', space=vmem, size = 0x9000, scoped, tag = 'internal scratch']
  %s0 = inlined_call_operand.hbm [shape: f32[8,32], index: 0, kind: input, shape index: {}]
  %s1 = inlined_call_operand.hbm [shape: f32[32,384], index: 1, kind: input, shape index: {}]
  %s2 = inlined_call_operand.hbm [shape: f32[64,384], index: 2, kind: input, shape index: {}]
  %s3 = inlined_call_operand.hbm [shape: f32[128,512], index: 3, kind: input, shape index: {}]
  %s4 = inlined_call_operand.hbm [shape: f32[256,1408], index: 4, kind: input, shape index: {}]
  %s5 = inlined_call_operand.hbm [shape: f32[1,3968], index: 5, kind: input, shape index: {}]
  %s6 = inlined_call_operand.hbm [shape: f32[8,16], index: 6, kind: output, shape index: {}]
  %s7 = sld [smem:[#allocation0]]
  $region58: #{tpu_custom_call.1} parent=0
    _
  %s9 = ssub.s32 1, %s7
  %s10 = scalar_select 0, %s9, %s7
  $region1: #{tpu_custom_call.1} parent=0
    #allocation2 [shape = 'u8[4096]{0}', space=vmem, size = 0x1000, scoped, tag = 'input window, operand 0, single buffered']
    #allocation3 [shape = 's32[1]{0}', space=sflag, size = 0x4, scoped, tag = 'scoped memory for tpu_custom_call.1']
    #allocation4 [shape = 's32[1]{0}', space=sflag, size = 0x4, scoped, tag = 'scoped memory for tpu_custom_call.1']
    #allocation5 [shape = 'u8[49152]{0}', space=vmem, size = 0xc000, scoped, tag = 'input window, operand 1, single buffered']
    #allocation6 [shape = 's32[1]{0}', space=sflag, size = 0x4, scoped, tag = 'scoped memory for tpu_custom_call.1']
    #allocation7 [shape = 'u8[98304]{0}', space=vmem, size = 0x18000, scoped, tag = 'input window, operand 2, single buffered']
    #allocation8 [shape = 'u8[262144]{0}', space=vmem, size = 0x40000, scoped, tag = 'input window, operand 3, single buffered']
    #allocation9 [shape = 's32[1]{0}', space=sflag, size = 0x4, scoped, tag = 'scoped memory for tpu_custom_call.1']
    #allocation10 [shape = 'u8[1441792]{0}', space=vmem, size = 0x160000, scoped, tag = 'input window, operand 4, single buffered']
    #allocation11 [shape = 'u8[15872]{0}', space=vmem, size = 0x4000, scoped, tag = 'input window, operand 5, single buffered']
    #allocation12 [shape = 's32[1]{0}', space=sflag, size = 0x4, scoped, tag = 'scoped memory for tpu_custom_call.1']
    #allocation13 [shape = 'u8[4096]{0}', space=vmem, size = 0x1000, scoped, tag = 'output window, operand 0, single buffered']
    %11 = vsyncpa [#allocation3], 0
    %12 = vsyncpa [#allocation6], 0
    %13 = vsyncpa [#allocation9], 0
    %14 = vsyncpa [#allocation12], 0
    %15 = vsyncpa [#allocation4], 0
    // Predicated region
    $region2: #{tpu_custom_call.1} parent=1 // pred_check
      _
    $region3: #{tpu_custom_call.1} parent=1 // pred_check_branch
      %17 = sbr.rel (0) target = $region5
    $region4: #{tpu_custom_call.1} parent=1 // pred_region
      %19 = vsyncadd [#allocation3], 0
      %s21 = sshll.u32 %s0, 4
      %s22 = int_to_ptr.hbm [resolvable:$true] %s21
      %s23 = sshll.u32 [#allocation2], 4
      %s24 = int_to_ptr.vmem [resolvable:$true] %s23
      %26 = dma.hbm_to_vmem [thread:$0]  %s22, 128, %s24, [#allocation3]
    $region5: #{tpu_custom_call.1} parent=1 // pred_fallthru
      _
    // Predicated region
    $region6: #{tpu_custom_call.1} parent=1 // pred_check
      _
    $region7: #{tpu_custom_call.1} parent=1 // pred_check_branch
      %28 = sbr.rel (0) target = $region9
    $region8: #{tpu_custom_call.1} parent=1 // pred_region
      %30 = vsyncadd [#allocation6], 0
      %s31 = sshll.u32 %s1, 4
      %s32 = int_to_ptr.hbm [resolvable:$true] %s31
      %s33 = sshll.u32 [#allocation5], 4
      %s34 = int_to_ptr.vmem [resolvable:$true] %s33
      %39 = dma.hbm_to_vmem [thread:$0]  %s32, 1536, %s34, [#allocation6], 384, 384, 24
    $region9: #{tpu_custom_call.1} parent=1 // pred_fallthru
      _
    // Predicated region
    $region10: #{tpu_custom_call.1} parent=1 // pred_check
      _
    $region11: #{tpu_custom_call.1} parent=1 // pred_check_branch
      %41 = sbr.rel (0) target = $region13
    $region12: #{tpu_custom_call.1} parent=1 // pred_region
      %43 = vsyncadd [#allocation6], 0
      %s44 = sshll.u32 %s2, 4
      %s45 = int_to_ptr.hbm [resolvable:$true] %s44
      %s46 = sshll.u32 [#allocation7], 4
      %s47 = int_to_ptr.vmem [resolvable:$true] %s46
      %52 = dma.hbm_to_vmem [thread:$0]  %s45, 3072, %s47, [#allocation6], 384, 384, 24
    $region13: #{tpu_custom_call.1} parent=1 // pred_fallthru
      _
    // Predicated region
    $region14: #{tpu_custom_call.1} parent=1 // pred_check
      _
    $region15: #{tpu_custom_call.1} parent=1 // pred_check_branch
      %54 = sbr.rel (0) target = $region17
    $region16: #{tpu_custom_call.1} parent=1 // pred_region
      %56 = vsyncadd [#allocation9], 0
      %s57 = sshll.u32 %s3, 4
      %s58 = int_to_ptr.hbm [resolvable:$true] %s57
      %s59 = sshll.u32 [#allocation8], 4
      %s60 = int_to_ptr.vmem [resolvable:$true] %s59
      %65 = dma.hbm_to_vmem [thread:$0]  %s58, 8192, %s60, [#allocation9], 512, 512, 32
    $region17: #{tpu_custom_call.1} parent=1 // pred_fallthru
      _
    // Predicated region
    $region18: #{tpu_custom_call.1} parent=1 // pred_check
      _
    $region19: #{tpu_custom_call.1} parent=1 // pred_check_branch
      %67 = sbr.rel (0) target = $region21
    $region20: #{tpu_custom_call.1} parent=1 // pred_region
      %69 = vsyncadd [#allocation9], 0
      %s70 = sshll.u32 %s4, 4
      %s71 = int_to_ptr.hbm [resolvable:$true] %s70
      %s72 = sshll.u32 [#allocation10], 4
      %s73 = int_to_ptr.vmem [resolvable:$true] %s72
      %78 = dma.hbm_to_vmem [thread:$0]  %s71, 45056, %s73, [#allocation9], 1408, 1408, 88
    $region21: #{tpu_custom_call.1} parent=1 // pred_fallthru
      _
    // Predicated region
    $region22: #{tpu_custom_call.1} parent=1 // pred_check
      _
    $region23: #{tpu_custom_call.1} parent=1 // pred_check_branch
      %80 = sbr.rel (0) target = $region25
    $region24: #{tpu_custom_call.1} parent=1 // pred_region
      %82 = vsyncadd [#allocation12], 0
      %s84 = sshll.u32 %s5, 4
      %s85 = int_to_ptr.hbm [resolvable:$true] %s84
      %s86 = sshll.u32 [#allocation11], 4
      %s87 = int_to_ptr.vmem [resolvable:$true] %s86
      %89 = dma.hbm_to_vmem [thread:$0]  %s85, 496, %s87, [#allocation12]
    $region25: #{tpu_custom_call.1} parent=1 // pred_fallthru
      _
    // Predicated region
    $region26: #{tpu_custom_call.1} parent=1 // pred_check
      _
    $region27: #{tpu_custom_call.1} parent=1 // pred_check_branch
      %91 = sbr.rel (0) target = $region29
    $region28: #{tpu_custom_call.1} parent=1 // pred_region
      %93 = dma.done [#allocation3], 128
    $region29: #{tpu_custom_call.1} parent=1 // pred_fallthru
      _
    // Predicated region
    $region30: #{tpu_custom_call.1} parent=1 // pred_check
      _
    $region31: #{tpu_custom_call.1} parent=1 // pred_check_branch
      %95 = sbr.rel (0) target = $region33
    $region32: #{tpu_custom_call.1} parent=1 // pred_region
      %97 = dma.done [#allocation6], 1536
    $region33: #{tpu_custom_call.1} parent=1 // pred_fallthru
      _
    // Predicated region
    $region34: #{tpu_custom_call.1} parent=1 // pred_check
      _
    $region35: #{tpu_custom_call.1} parent=1 // pred_check_branch
      %99 = sbr.rel (0) target = $region37
    $region36: #{tpu_custom_call.1} parent=1 // pred_region
      %101 = dma.done [#allocation6], 3072
    $region37: #{tpu_custom_call.1} parent=1 // pred_fallthru
      _
    // Predicated region
    $region38: #{tpu_custom_call.1} parent=1 // pred_check
      _
    $region39: #{tpu_custom_call.1} parent=1 // pred_check_branch
      %103 = sbr.rel (0) target = $region41
    $region40: #{tpu_custom_call.1} parent=1 // pred_region
      %105 = dma.done [#allocation9], 8192
    $region41: #{tpu_custom_call.1} parent=1 // pred_fallthru
      _
    // Predicated region
    $region42: #{tpu_custom_call.1} parent=1 // pred_check
      _
    $region43: #{tpu_custom_call.1} parent=1 // pred_check_branch
      %107 = sbr.rel (0) target = $region45
    $region44: #{tpu_custom_call.1} parent=1 // pred_region
      %109 = dma.done [#allocation9], 45056
    $region45: #{tpu_custom_call.1} parent=1 // pred_fallthru
      _
    // Predicated region
    $region46: #{tpu_custom_call.1} parent=1 // pred_check
      _
    $region47: #{tpu_custom_call.1} parent=1 // pred_check_branch
      %111 = sbr.rel (0) target = $region49
    $region48: #{tpu_custom_call.1} parent=1 // pred_region
      %113 = dma.done [#allocation12], 496
    $region49: #{tpu_custom_call.1} parent=1 // pred_fallthru
      _
    %v114 = vld [vmem:[#allocation2] sm:$0xff]
    %v115 = vld [vmem:[#allocation11] sm:$0x3]
    %117 = vset.pattern.permute.xlu0 16
    %118 = vperm.xlu0 %117, %v114
    %v119 = vpop.permute.xlu0 %118
    %v122 = vperm.slane %v115, 0
    %v123 = vperm.slane %v115, 1
    %v126 = vmul.f32 %v119, %v122
    %v127 = vmul.f32 %v119, %v123
    %v128 = vld [vmem:[#allocation11 + $0x2] sm:$0x3]
    %v130 = vperm.slane %v128, 0
    %v131 = vperm.slane %v128, 1
    %v134 = vadd.f32 %v126, %v130
    %v135 = vadd.f32 %v127, %v131
    %v136 = vand.u32 2147483647, %v134
    %vm137 = vcmp.le.f32.partialorder %v136, 0.7853982
    %vm138 = vcmp.lt.s32.totalorder %v134, 0
    %v139 = vand.u32 %v134, 2139095040
    %v140 = vshrl.u32 %v139, 23
    %v141 = vsub.s32 %v140, 127
    %v142 = vand.u32 2147483647, %v134
    %v143 = vand.u32 %v142, 8388607
    %v144 = vor.u32 %v143, 8388608
    %v145 = vsub.s32 0, %v144
    %v146 = vadd.s32 %v141, 1
    %vm147 = vcmp.gt.s32.totalorder %v146, 0
    %v148 = vsel %vm147, %v146, 0
    %v149 = vshrl.u32 %v148, 5
    %v150 = vand.u32 %v148, 31
    %v151 = vsub.s32 32, %v150
    %v152 = vshrl.u32 683565275, %v151
    %v153 = vshll.u32 683565275, %v150
    %v154 = vshrl.u32 2475754826, %v151
    %v155 = vor.u32 %v153, %v154
    %v156 = vshll.u32 2475754826, %v150
    %v157 = vshrl.u32 2131351028, %v151
    %v158 = vor.u32 %v156, %v157
    %v159 = vshll.u32 2131351028, %v150
    %v160 = vshrl.u32 2102212464, %v151
    %v161 = vor.u32 %v159, %v160
    %v162 = vshll.u32 2102212464, %v150
    %v163 = vshrl.u32 920167782, %v151
    %v164 = vor.u32 %v162, %v163
    %v165 = vshll.u32 920167782, %v150
    %v166 = vshrl.u32 1326507024, %v151
    %v167 = vor.u32 %v165, %v166
    %vm168 = vcmp.lt.s32.totalorder %v149, 1
    %vm169 = vcmp.lt.s32.totalorder %v149, 2
    %vm170 = vcmp.lt.s32.totalorder %v149, 3
    %vm171 = vcmp.lt.s32.totalorder %v149, 4
    %v172 = vsel %vm168, %v152, %v155
    %v173 = vsel %vm171, %v161, 2102212464
    %v174 = vsel %vm170, %v158, %v173
    %v175 = vsel %vm169, %v172, %v174
    %v176 = vsel %vm168, %v155, %v158
    %v177 = vsel %vm171, %v164, 920167782
    %v178 = vsel %vm170, %v161, %v177
    %v179 = vsel %vm169, %v176, %v178
    %v180 = vsel %vm168, %v158, %v161
    %v181 = vsel %vm171, %v167, 1326507024
    %v182 = vsel %vm170, %v164, %v181
    %v183 = vsel %vm169, %v180, %v182
    %v184 = vshll.u32 %v144, 8
    %v185 = vand.u32 %v184, 65535
    %v186 = vshrl.u32 %v184, 16
    %v187 = vand.u32 %v183, 65535
    %v188 = vshrl.u32 %v183, 16
    %v189 = vmul.u32 %v185, %v187
    %v190 = vmul.u32 %v185, %v188
    %v191 = vmul.u32 %v186, %v187
    %v192 = vmul.u32 %v186, %v188
    %v193 = vshll.u32 %v190, 16
    %v194 = vshrl.u32 %v190, 16
    %v195 = vshll.u32 %v191, 16
    %v196 = vshrl.u32 %v191, 16
    %vm197 = vc.u32 %v189, %v193
    %v198 = vsel %vm197, 1, 0
    %v199 = vadd.s32 %v189, %v193
    %v200 = vadd.s32 %v192, %v198
    %vm201 = vc.u32 %v199, %v195
    %v202 = vsel %vm201, 1, 0
    %v203 = vadd.s32 %v199, %v195
    %v204 = vadd.s32 %v200, %v202
    %v205 = vadd.s32 %v204, %v194
    %v206 = vadd.s32 %v205, %v196
    %v207 = vand.u32 %v184, 65535
    %v208 = vshrl.u32 %v184, 16
    %v209 = vand.u32 %v179, 65535
    %v210 = vshrl.u32 %v179, 16
    %v211 = vmul.u32 %v207, %v209
    %v212 = vmul.u32 %v207, %v210
    %v213 = vmul.u32 %v208, %v209
    %v214 = vmul.u32 %v208, %v210
    %v215 = vshll.u32 %v212, 16
    %v216 = vshrl.u32 %v212, 16
    %v217 = vshll.u32 %v213, 16
    %v218 = vshrl.u32 %v213, 16
    %vm219 = vc.u32 %v211, %v215
    %v220 = vsel %vm219, 1, 0
    %v221 = vadd.s32 %v211, %v215
    %v222 = vadd.s32 %v214, %v220
    %vm223 = vc.u32 %v221, %v217
    %v224 = vsel %vm223, 1, 0
    %v225 = vadd.s32 %v221, %v217
    %v226 = vadd.s32 %v222, %v224
    %v227 = vadd.s32 %v226, %v216
    %v228 = vadd.s32 %v227, %v218
    %v229 = vmul.u32 %v184, %v175
    %v230 = vadd.s32 %v206, %v225
    %vm231 = vc.u32 %v206, %v225
    %v232 = vadd.s32 %v228, 1
    %v233 = vsel %vm231, %v232, %v228
    %v234 = vadd.s32 %v229, %v233
    %v235 = vadd.s32 %v234, 536870912
    %v236 = vshrl.u32 %v235, 30
    %v237 = vshll.u32 %v236, 30
    %v238 = vsub.s32 %v234, %v237
    %vm239 = vcmp.lt.s32.totalorder %v238, 0
    %v240 = vsub.s32 0, %v238
    %v241 = vsel %vm239, %v240, %v238
    %v242 = vclz %v241
    %v243 = vsub.s32 %v242, 2
    %vm244 = vcmp.gt.s32.totalorder 0, %v243
    %v245 = vsel %vm244, 0, %v243
    %v246 = vsub.s32 32, %v245
    %v247 = vshll.u32 %v238, %v245
    %v248 = vshrl.u32 %v230, %v246
    %v249 = vor.u32 %v247, %v248
    %v250 = vsub.s32 4294967266, %v245
    %v251 = vadd.s32 %v250, 127
    %v252 = vshll.u32 %v251, 23
    %v253 = vor.u32 4788187, %v252
    %v254 = vand.u32 2147483647, %v253
    %v256 = vcvt.s32.f32 %v249
    %v257 = vmul.f32 %v256, %v254
    %v258 = vxor.u32 %v257, 2147483648
    %v259 = vsel %vm138, %v258, %v257
    %v260 = vsub.s32 4, %v236
    %v261 = vsel %vm138, %v260, %v236
    %v262 = vsel %vm137, %v134, %v259
    %v263 = vsel %vm137, 0, %v261
    %v264 = vmul.f32 %v262, %v262
    %v265 = vmul.f32 %v264, -0.001358992
    %v266 = vadd.f32 %v265, 0.041655596
    %v267 = vmul.f32 %v264, %v266
    %v268 = vadd.f32 %v267, -0.4999988
    %v269 = vmul.f32 %v264, %v268
    %v270 = vadd.f32 1.0, %v269
    %v271 = vmul.f32 %v262, %v262
    %v272 = vmul.f32 %v271, -0.00019511016
    %v273 = vadd.f32 %v272, 0.008332121
    %v274 = vmul.f32 %v271, %v273
    %v275 = vadd.f32 %v274, -0.16666654
    %v276 = vmul.f32 %v271, %v275
    %v277 = vadd.f32 %v276, 1.0
    %v278 = vmul.f32 %v277, %v262
    %vm279 = vweird.f32 %v134
    %v280 = vadd.s32 %v263, 3
    %v281 = vand.u32 %v280, 3
    %vm282 = vcmp.lt.s32.totalorder %v281, 2
    %vm283 = vcmp.eq.s32.totalorder %v281, 0
    %v284 = vxor.u32 %v278, 2147483648
    %v285 = vsel %vm283, %v270, %v284
    %vm286 = vcmp.eq.s32.totalorder %v281, 2
    %v287 = vxor.u32 %v270, 2147483648
    %v288 = vsel %vm286, %v287, %v278
    %v289 = vsel %vm282, %v285, %v288
    %v290 = vsel %vm279, nan, %v289
    %v291 = vand.u32 2147483647, %v135
    %vm292 = vcmp.le.f32.partialorder %v291, 0.7853982
    %vm293 = vcmp.lt.s32.totalorder %v135, 0
    %v294 = vand.u32 %v135, 2139095040
    %v295 = vshrl.u32 %v294, 23
    %v296 = vsub.s32 %v295, 127
    %v297 = vand.u32 2147483647, %v135
    %v298 = vand.u32 %v297, 8388607
    %v299 = vor.u32 %v298, 8388608
    %v300 = vsub.s32 0, %v299
    %v301 = vadd.s32 %v296, 1
    %vm302 = vcmp.gt.s32.totalorder %v301, 0
    %v303 = vsel %vm302, %v301, 0
    %v304 = vshrl.u32 %v303, 5
    %v305 = vand.u32 %v303, 31
    %v306 = vsub.s32 32, %v305
    %v307 = vshrl.u32 683565275, %v306
    %v308 = vshll.u32 683565275, %v305
    %v309 = vshrl.u32 2475754826, %v306
    %v310 = vor.u32 %v308, %v309
    %v311 = vshll.u32 2475754826, %v305
    %v312 = vshrl.u32 2131351028, %v306
    %v313 = vor.u32 %v311, %v312
    %v314 = vshll.u32 2131351028, %v305
    %v315 = vshrl.u32 2102212464, %v306
    %v316 = vor.u32 %v314, %v315
    %v317 = vshll.u32 2102212464, %v305
    %v318 = vshrl.u32 920167782, %v306
    %v319 = vor.u32 %v317, %v318
    %v320 = vshll.u32 920167782, %v305
    %v321 = vshrl.u32 1326507024, %v306
    %v322 = vor.u32 %v320, %v321
    %vm323 = vcmp.lt.s32.totalorder %v304, 1
    %vm324 = vcmp.lt.s32.totalorder %v304, 2
    %vm325 = vcmp.lt.s32.totalorder %v304, 3
    %vm326 = vcmp.lt.s32.totalorder %v304, 4
    %v327 = vsel %vm323, %v307, %v310
    %v328 = vsel %vm326, %v316, 2102212464
    %v329 = vsel %vm325, %v313, %v328
    %v330 = vsel %vm324, %v327, %v329
    %v331 = vsel %vm323, %v310, %v313
    %v332 = vsel %vm326, %v319, 920167782
    %v333 = vsel %vm325, %v316, %v332
    %v334 = vsel %vm324, %v331, %v333
    %v335 = vsel %vm323, %v313, %v316
    %v336 = vsel %vm326, %v322, 1326507024
    %v337 = vsel %vm325, %v319, %v336
    %v338 = vsel %vm324, %v335, %v337
    %v339 = vshll.u32 %v299, 8
    %v340 = vand.u32 %v339, 65535
    %v341 = vshrl.u32 %v339, 16
    %v342 = vand.u32 %v338, 65535
    %v343 = vshrl.u32 %v338, 16
    %v344 = vmul.u32 %v340, %v342
    %v345 = vmul.u32 %v340, %v343
    %v346 = vmul.u32 %v341, %v342
    %v347 = vmul.u32 %v341, %v343
    %v348 = vshll.u32 %v345, 16
    %v349 = vshrl.u32 %v345, 16
    %v350 = vshll.u32 %v346, 16
    %v351 = vshrl.u32 %v346, 16
    %vm352 = vc.u32 %v344, %v348
    %v353 = vsel %vm352, 1, 0
    %v354 = vadd.s32 %v344, %v348
    %v355 = vadd.s32 %v347, %v353
    %vm356 = vc.u32 %v354, %v350
    %v357 = vsel %vm356, 1, 0
    %v358 = vadd.s32 %v354, %v350
    %v359 = vadd.s32 %v355, %v357
    %v360 = vadd.s32 %v359, %v349
    %v361 = vadd.s32 %v360, %v351
    %v362 = vand.u32 %v339, 65535
    %v363 = vshrl.u32 %v339, 16
    %v364 = vand.u32 %v334, 65535
    %v365 = vshrl.u32 %v334, 16
    %v366 = vmul.u32 %v362, %v364
    %v367 = vmul.u32 %v362, %v365
    %v368 = vmul.u32 %v363, %v364
    %v369 = vmul.u32 %v363, %v365
    %v370 = vshll.u32 %v367, 16
    %v371 = vshrl.u32 %v367, 16
    %v372 = vshll.u32 %v368, 16
    %v373 = vshrl.u32 %v368, 16
    %vm374 = vc.u32 %v366, %v370
    %v375 = vsel %vm374, 1, 0
    %v376 = vadd.s32 %v366, %v370
    %v377 = vadd.s32 %v369, %v375
    %vm378 = vc.u32 %v376, %v372
    %v379 = vsel %vm378, 1, 0
    %v380 = vadd.s32 %v376, %v372
    %v381 = vadd.s32 %v377, %v379
    %v382 = vadd.s32 %v381, %v371
    %v383 = vadd.s32 %v382, %v373
    %v384 = vmul.u32 %v339, %v330
    %v385 = vadd.s32 %v361, %v380
    %vm386 = vc.u32 %v361, %v380
    %v387 = vadd.s32 %v383, 1
    %v388 = vsel %vm386, %v387, %v383
    %v389 = vadd.s32 %v384, %v388
    %v390 = vadd.s32 %v389, 536870912
    %v391 = vshrl.u32 %v390, 30
    %v392 = vshll.u32 %v391, 30
    %v393 = vsub.s32 %v389, %v392
    %vm394 = vcmp.lt.s32.totalorder %v393, 0
    %v395 = vsub.s32 0, %v393
    %v396 = vsel %vm394, %v395, %v393
    %v397 = vclz %v396
    %v398 = vsub.s32 %v397, 2
    %vm399 = vcmp.gt.s32.totalorder 0, %v398
    %v400 = vsel %vm399, 0, %v398
    %v401 = vsub.s32 32, %v400
    %v402 = vshll.u32 %v393, %v400
    %v403 = vshrl.u32 %v385, %v401
    %v404 = vor.u32 %v402, %v403
    %v405 = vsub.s32 4294967266, %v400
    %v406 = vadd.s32 %v405, 127
    %v407 = vshll.u32 %v406, 23
    %v408 = vor.u32 4788187, %v407
    %v409 = vand.u32 2147483647, %v408
    %v411 = vcvt.s32.f32 %v404
    %v412 = vmul.f32 %v411, %v409
    %v413 = vxor.u32 %v412, 2147483648
    %v414 = vsel %vm293, %v413, %v412
    %v415 = vsub.s32 4, %v391
    %v416 = vsel %vm293, %v415, %v391
    %v417 = vsel %vm292, %v135, %v414
    %v418 = vsel %vm292, 0, %v416
    %v419 = vmul.f32 %v417, %v417
    %v420 = vmul.f32 %v419, -0.001358992
    %v421 = vadd.f32 %v420, 0.041655596
    %v422 = vmul.f32 %v419, %v421
    %v423 = vadd.f32 %v422, -0.4999988
    %v424 = vmul.f32 %v419, %v423
    %v425 = vadd.f32 1.0, %v424
    %v426 = vmul.f32 %v417, %v417
    %v427 = vmul.f32 %v426, -0.00019511016
    %v428 = vadd.f32 %v427, 0.008332121
    %v429 = vmul.f32 %v426, %v428
    %v430 = vadd.f32 %v429, -0.16666654
    %v431 = vmul.f32 %v426, %v430
    %v432 = vadd.f32 %v431, 1.0
    %v433 = vmul.f32 %v432, %v417
    %vm434 = vweird.f32 %v135
    %v435 = vadd.s32 %v418, 3
    %v436 = vand.u32 %v435, 3
    %vm437 = vcmp.lt.s32.totalorder %v436, 2
    %vm438 = vcmp.eq.s32.totalorder %v436, 0
    %v439 = vxor.u32 %v433, 2147483648
    %v440 = vsel %vm438, %v425, %v439
    %vm441 = vcmp.eq.s32.totalorder %v436, 2
    %v442 = vxor.u32 %v425, 2147483648
    %v443 = vsel %vm441, %v442, %v433
    %v444 = vsel %vm437, %v440, %v443
    %v445 = vsel %vm434, nan, %v444
    %v446 = vld [vmem:[#allocation10] sm:$0xff]
    %v447 = vld [vmem:[#allocation10 + $0x8] sm:$0xff]
    %v448 = vld [vmem:[#allocation10 + $0x58] sm:$0xff]
    %v449 = vld [vmem:[#allocation10 + $0x60] sm:$0xff]
    %v450 = vld [vmem:[#allocation10 + $0xb0] sm:$0xff]
    %v451 = vld [vmem:[#allocation10 + $0xb8] sm:$0xff]
    %v452 = vld [vmem:[#allocation10 + $0x108] sm:$0xff]
    %v453 = vld [vmem:[#allocation10 + $0x110] sm:$0xff]
    %v454 = vld [vmem:[#allocation10 + $0x160] sm:$0xff]
    %v455 = vld [vmem:[#allocation10 + $0x168] sm:$0xff]
    %v456 = vld [vmem:[#allocation10 + $0x1b8] sm:$0xff]
    %v457 = vld [vmem:[#allocation10 + $0x1c0] sm:$0xff]
    %v458 = vld [vmem:[#allocation10 + $0x210] sm:$0xff]
    %v459 = vld [vmem:[#allocation10 + $0x218] sm:$0xff]
    %v460 = vld [vmem:[#allocation10 + $0x268] sm:$0xff]
    %v461 = vld [vmem:[#allocation10 + $0x270] sm:$0xff]
    %v462 = vld [vmem:[#allocation10 + $0x2c0] sm:$0xff]
    %v463 = vld [vmem:[#allocation10 + $0x2c8] sm:$0xff]
    %v464 = vld [vmem:[#allocation10 + $0x318] sm:$0xff]
    %v465 = vld [vmem:[#allocation10 + $0x320] sm:$0xff]
    %v466 = vld [vmem:[#allocation10 + $0x370] sm:$0xff]
    %v467 = vld [vmem:[#allocation10 + $0x378] sm:$0xff]
    %v468 = vld [vmem:[#allocation10 + $0x3c8] sm:$0xff]
    %v469 = vld [vmem:[#allocation10 + $0x3d0] sm:$0xff]
    %v470 = vld [vmem:[#allocation10 + $0x420] sm:$0xff]
    %v471 = vld [vmem:[#allocation10 + $0x428] sm:$0xff]
    %v472 = vld [vmem:[#allocation10 + $0x478] sm:$0xff]
    %v473 = vld [vmem:[#allocation10 + $0x480] sm:$0xff]
    %v474 = vld [vmem:[#allocation10 + $0x4d0] sm:$0xff]
    %v475 = vld [vmem:[#allocation10 + $0x4d8] sm:$0xff]
    %v476 = vld [vmem:[#allocation10 + $0x528] sm:$0xff]
    %v477 = vld [vmem:[#allocation10 + $0x530] sm:$0xff]
    %v478 = vld [vmem:[#allocation10 + $0x580] sm:$0xff]
    %v479 = vld [vmem:[#allocation10 + $0x588] sm:$0xff]
    %v480 = vld [vmem:[#allocation10 + $0x5d8] sm:$0xff]
    %v481 = vld [vmem:[#allocation10 + $0x5e0] sm:$0xff]
    %v482 = vld [vmem:[#allocation10 + $0x630] sm:$0xff]
    %v483 = vld [vmem:[#allocation10 + $0x638] sm:$0xff]
    %v484 = vld [vmem:[#allocation10 + $0x688] sm:$0xff]
    %v485 = vld [vmem:[#allocation10 + $0x690] sm:$0xff]
    %v486 = vld [vmem:[#allocation10 + $0x6e0] sm:$0xff]
    %v487 = vld [vmem:[#allocation10 + $0x6e8] sm:$0xff]
    %v488 = vld [vmem:[#allocation10 + $0x738] sm:$0xff]
    %v489 = vld [vmem:[#allocation10 + $0x740] sm:$0xff]
    %v490 = vld [vmem:[#allocation10 + $0x790] sm:$0xff]
    %v491 = vld [vmem:[#allocation10 + $0x798] sm:$0xff]
    %v492 = vld [vmem:[#allocation10 + $0x7e8] sm:$0xff]
    %v493 = vld [vmem:[#allocation10 + $0x7f0] sm:$0xff]
    %v494 = vld [vmem:[#allocation10 + $0x840] sm:$0xff]
    %v495 = vld [vmem:[#allocation10 + $0x848] sm:$0xff]
    %v496 = vld [vmem:[#allocation10 + $0x898] sm:$0xff]
    %v497 = vld [vmem:[#allocation10 + $0x8a0] sm:$0xff]
    %v498 = vld [vmem:[#allocation10 + $0x8f0] sm:$0xff]
    %v499 = vld [vmem:[#allocation10 + $0x8f8] sm:$0xff]
    %v500 = vld [vmem:[#allocation10 + $0x948] sm:$0xff]
    %v501 = vld [vmem:[#allocation10 + $0x950] sm:$0xff]
    %v502 = vld [vmem:[#allocation10 + $0x9a0] sm:$0xff]
    %v503 = vld [vmem:[#allocation10 + $0x9a8] sm:$0xff]
    %v504 = vld [vmem:[#allocation10 + $0x9f8] sm:$0xff]
    %v505 = vld [vmem:[#allocation10 + $0xa00] sm:$0xff]
    %v506 = vld [vmem:[#allocation10 + $0xa50] sm:$0xff]
    %v507 = vld [vmem:[#allocation10 + $0xa58] sm:$0xff]
    %v508 = vld [vmem:[#allocation10 + $0xaa8] sm:$0xff]
    %v509 = vld [vmem:[#allocation10 + $0xab0] sm:$0xff]
    %v510 = vld [vmem:[#allocation11 + $0x4] sm:$0x3]
    %v512 = vperm.slane %v510, 0
    %v513 = vperm.slane %v510, 1
    %516 = vmatpush.msra.mxu0 %v476
    %517 = vmatpush.msra.mxu0 %v474
    %518 = vmatpush.msra.mxu0 %v472
    %519 = vmatpush.msra.mxu0 %v470
    %520 = vmatpush.msra.mxu0 %v468
    %521 = vmatpush.msra.mxu0 %v466
    %522 = vmatpush.msra.mxu0 %v464
    %523 = vmatpush.msra.mxu0 %v462
    %524 = vmatpush.msra.mxu0 %v460
    %525 = vmatpush.msra.mxu0 %v458
    %526 = vmatpush.msra.mxu0 %v456
    %527 = vmatpush.msra.mxu0 %v454
    %528 = vmatpush.msra.mxu0 %v452
    %529 = vmatpush.msra.mxu0 %v450
    %530 = vmatpush.msra.mxu0 %v448
    %531 = vmatpush.msra.mxu0 %v446
    %532 = vmatmul.f32.gmra.mxu0 %v290
    %v533 = vpop.f32.mrf.mxu0
    %v534 = vadd.f32 %v512, %v533
    %535 = vdwg.mxu0
    %536 = vmatpush.msra.mxu0 %v508
    %537 = vmatpush.msra.mxu0 %v506
    %538 = vmatpush.msra.mxu0 %v504
    %539 = vmatpush.msra.mxu0 %v502
    %540 = vmatpush.msra.mxu0 %v500
    %541 = vmatpush.msra.mxu0 %v498
    %542 = vmatpush.msra.mxu0 %v496
    %543 = vmatpush.msra.mxu0 %v494
    %544 = vmatpush.msra.mxu0 %v492
    %545 = vmatpush.msra.mxu0 %v490
    %546 = vmatpush.msra.mxu0 %v488
    %547 = vmatpush.msra.mxu0 %v486
    %548 = vmatpush.msra.mxu0 %v484
    %549 = vmatpush.msra.mxu0 %v482
    %550 = vmatpush.msra.mxu0 %v480
    %551 = vmatpush.msra.mxu0 %v478
    %552 = vmatmul.f32.gmra.mxu0 %v445
    %v553 = vpop.f32.mrf.mxu0
    %v554 = vadd.f32 %v534, %v553
    %555 = vdwg.mxu0
    %556 = vmatpush.msra.mxu0 %v477
    %557 = vmatpush.msra.mxu0 %v475
    %558 = vmatpush.msra.mxu0 %v473
    %559 = vmatpush.msra.mxu0 %v471
    %560 = vmatpush.msra.mxu0 %v469
    %561 = vmatpush.msra.mxu0 %v467
    %562 = vmatpush.msra.mxu0 %v465
    %563 = vmatpush.msra.mxu0 %v463
    %564 = vmatpush.msra.mxu0 %v461
    %565 = vmatpush.msra.mxu0 %v459
    %566 = vmatpush.msra.mxu0 %v457
    %567 = vmatpush.msra.mxu0 %v455
    %568 = vmatpush.msra.mxu0 %v453
    %569 = vmatpush.msra.mxu0 %v451
    %570 = vmatpush.msra.mxu0 %v449
    %571 = vmatpush.msra.mxu0 %v447
    %572 = vmatmul.f32.gmra.mxu0 %v290
    %v573 = vpop.f32.mrf.mxu0
    %v574 = vadd.f32 %v513, %v573
    %575 = vdwg.mxu0
    %576 = vmatpush.msra.mxu0 %v509
    %577 = vmatpush.msra.mxu0 %v507
    %578 = vmatpush.msra.mxu0 %v505
    %579 = vmatpush.msra.mxu0 %v503
    %580 = vmatpush.msra.mxu0 %v501
    %581 = vmatpush.msra.mxu0 %v499
    %582 = vmatpush.msra.mxu0 %v497
    %583 = vmatpush.msra.mxu0 %v495
    %584 = vmatpush.msra.mxu0 %v493
    %585 = vmatpush.msra.mxu0 %v491
    %586 = vmatpush.msra.mxu0 %v489
    %587 = vmatpush.msra.mxu0 %v487
    %588 = vmatpush.msra.mxu0 %v485
    %589 = vmatpush.msra.mxu0 %v483
    %590 = vmatpush.msra.mxu0 %v481
    %591 = vmatpush.msra.mxu0 %v479
    %592 = vmatmul.f32.gmra.mxu0 %v445
    %v593 = vpop.f32.mrf.mxu0
    %v594 = vadd.f32 %v574, %v593
    %595 = vdwg.mxu0
    %v596 = vxor.u32 %v554, 2147483648
    %v597 = vxor.u32 %v594, 2147483648
    %v598 = vmul.f32 %v596, 1.442695
    %v599 = vpow.pop %v598
    %v600 = vmul.f32 %v597, 1.442695
    %v601 = vpow.pop %v600
    %v602 = vadd.f32 %v599, 1.0
    %v603 = vadd.f32 %v601, 1.0
    %v604 = vrcp.pop %v602
    %v605 = vmul.f32 %v602, %v604
    %v606 = vsub.f32 1.0, %v605
    %v607 = vmul.f32 %v604, %v606
    %v608 = vadd.f32 %v604, %v607
    %vm609 = vweird.f32 %v602
    %vm610 = vweird.f32 %v604
    %vm611 = vmor %vm609, %vm610
    %v612 = vsel %vm611, %v604, %v608
    %v613 = vand.u32 2147483647, %v602
    %vm614 = vcmp.eq.f32.partialorder %v613, 8.507059e+37
    %v615 = vand.u32 %v602, 2147483648
    %v616 = vor.u32 1.1754944e-38, %v615
    %v617 = vsel %vm614, %v616, %v612
    %v618 = vmul.f32 1.0, %v617
    %v619 = vrcp.pop %v603
    %v620 = vmul.f32 %v603, %v619
    %v621 = vsub.f32 1.0, %v620
    %v622 = vmul.f32 %v619, %v621
    %v623 = vadd.f32 %v619, %v622
    %vm624 = vweird.f32 %v603
    %vm625 = vweird.f32 %v619
    %vm626 = vmor %vm624, %vm625
    %v627 = vsel %vm626, %v619, %v623
    %v628 = vand.u32 2147483647, %v603
    %vm629 = vcmp.eq.f32.partialorder %v628, 8.507059e+37
    %v630 = vand.u32 %v603, 2147483648
    %v631 = vor.u32 1.1754944e-38, %v630
    %v632 = vsel %vm629, %v631, %v627
    %v633 = vmul.f32 1.0, %v632
    %v634 = vmul.f32 %v554, %v618
    %v635 = vmul.f32 %v594, %v633
    %v636 = vld [vmem:[#allocation10 + $0x10] sm:$0xff]
    %v637 = vld [vmem:[#allocation10 + $0x18] sm:$0xff]
    %v638 = vld [vmem:[#allocation10 + $0x20] sm:$0xff]
    %v639 = vld [vmem:[#allocation10 + $0x28] sm:$0xff]
    %v640 = vld [vmem:[#allocation10 + $0x30] sm:$0xff]
    %v641 = vld [vmem:[#allocation10 + $0x38] sm:$0xff]
    %v642 = vld [vmem:[#allocation10 + $0x40] sm:$0xff]
    %v643 = vld [vmem:[#allocation10 + $0x48] sm:$0xff]
    %v644 = vld [vmem:[#allocation10 + $0x68] sm:$0xff]
    %v645 = vld [vmem:[#allocation10 + $0x70] sm:$0xff]
    %v646 = vld [vmem:[#allocation10 + $0x78] sm:$0xff]
    %v647 = vld [vmem:[#allocation10 + $0x80] sm:$0xff]
    %v648 = vld [vmem:[#allocation10 + $0x88] sm:$0xff]
    %v649 = vld [vmem:[#allocation10 + $0x90] sm:$0xff]
    %v650 = vld [vmem:[#allocation10 + $0x98] sm:$0xff]
    %v651 = vld [vmem:[#allocation10 + $0xa0] sm:$0xff]
    %v652 = vld [vmem:[#allocation10 + $0xc0] sm:$0xff]
    %v653 = vld [vmem:[#allocation10 + $0xc8] sm:$0xff]
    %v654 = vld [vmem:[#allocation10 + $0xd0] sm:$0xff]
    %v655 = vld [vmem:[#allocation10 + $0xd8] sm:$0xff]
    %v656 = vld [vmem:[#allocation10 + $0xe0] sm:$0xff]
    %v657 = vld [vmem:[#allocation10 + $0xe8] sm:$0xff]
    %v658 = vld [vmem:[#allocation10 + $0xf0] sm:$0xff]
    %v659 = vld [vmem:[#allocation10 + $0xf8] sm:$0xff]
    %v660 = vld [vmem:[#allocation10 + $0x118] sm:$0xff]
    %v661 = vld [vmem:[#allocation10 + $0x120] sm:$0xff]
    %v662 = vld [vmem:[#allocation10 + $0x128] sm:$0xff]
    %v663 = vld [vmem:[#allocation10 + $0x130] sm:$0xff]
    %v664 = vld [vmem:[#allocation10 + $0x138] sm:$0xff]
    %v665 = vld [vmem:[#allocation10 + $0x140] sm:$0xff]
    %v666 = vld [vmem:[#allocation10 + $0x148] sm:$0xff]
    %v667 = vld [vmem:[#allocation10 + $0x150] sm:$0xff]
    %v668 = vld [vmem:[#allocation10 + $0x170] sm:$0xff]
    %v669 = vld [vmem:[#allocation10 + $0x178] sm:$0xff]
    %v670 = vld [vmem:[#allocation10 + $0x180] sm:$0xff]
    %v671 = vld [vmem:[#allocation10 + $0x188] sm:$0xff]
    %v672 = vld [vmem:[#allocation10 + $0x190] sm:$0xff]
    %v673 = vld [vmem:[#allocation10 + $0x198] sm:$0xff]
    %v674 = vld [vmem:[#allocation10 + $0x1a0] sm:$0xff]
    %v675 = vld [vmem:[#allocation10 + $0x1a8] sm:$0xff]
    %v676 = vld [vmem:[#allocation10 + $0x1c8] sm:$0xff]
    %v677 = vld [vmem:[#allocation10 + $0x1d0] sm:$0xff]
    %v678 = vld [vmem:[#allocation10 + $0x1d8] sm:$0xff]
    %v679 = vld [vmem:[#allocation10 + $0x1e0] sm:$0xff]
    %v680 = vld [vmem:[#allocation10 + $0x1e8] sm:$0xff]
    %v681 = vld [vmem:[#allocation10 + $0x1f0] sm:$0xff]
    %v682 = vld [vmem:[#allocation10 + $0x1f8] sm:$0xff]
    %v683 = vld [vmem:[#allocation10 + $0x200] sm:$0xff]
    %v684 = vld [vmem:[#allocation10 + $0x220] sm:$0xff]
    %v685 = vld [vmem:[#allocation10 + $0x228] sm:$0xff]
    %v686 = vld [vmem:[#allocation10 + $0x230] sm:$0xff]
    %v687 = vld [vmem:[#allocation10 + $0x238] sm:$0xff]
    %v688 = vld [vmem:[#allocation10 + $0x240] sm:$0xff]
    %v689 = vld [vmem:[#allocation10 + $0x248] sm:$0xff]
    %v690 = vld [vmem:[#allocation10 + $0x250] sm:$0xff]
    %v691 = vld [vmem:[#allocation10 + $0x258] sm:$0xff]
    %v692 = vld [vmem:[#allocation10 + $0x278] sm:$0xff]
    %v693 = vld [vmem:[#allocation10 + $0x280] sm:$0xff]
    %v694 = vld [vmem:[#allocation10 + $0x288] sm:$0xff]
    %v695 = vld [vmem:[#allocation10 + $0x290] sm:$0xff]
    %v696 = vld [vmem:[#allocation10 + $0x298] sm:$0xff]
    %v697 = vld [vmem:[#allocation10 + $0x2a0] sm:$0xff]
    %v698 = vld [vmem:[#allocation10 + $0x2a8] sm:$0xff]
    %v699 = vld [vmem:[#allocation10 + $0x2b0] sm:$0xff]
    %v700 = vld [vmem:[#allocation10 + $0x2d0] sm:$0xff]
    %v701 = vld [vmem:[#allocation10 + $0x2d8] sm:$0xff]
    %v702 = vld [vmem:[#allocation10 + $0x2e0] sm:$0xff]
    %v703 = vld [vmem:[#allocation10 + $0x2e8] sm:$0xff]
    %v704 = vld [vmem:[#allocation10 + $0x2f0] sm:$0xff]
    %v705 = vld [vmem:[#allocation10 + $0x2f8] sm:$0xff]
    %v706 = vld [vmem:[#allocation10 + $0x300] sm:$0xff]
    %v707 = vld [vmem:[#allocation10 + $0x308] sm:$0xff]
    %v708 = vld [vmem:[#allocation10 + $0x328] sm:$0xff]
    %v709 = vld [vmem:[#allocation10 + $0x330] sm:$0xff]
    %v710 = vld [vmem:[#allocation10 + $0x338] sm:$0xff]
    %v711 = vld [vmem:[#allocation10 + $0x340] sm:$0xff]
    %v712 = vld [vmem:[#allocation10 + $0x348] sm:$0xff]
    %v713 = vld [vmem:[#allocation10 + $0x350] sm:$0xff]
    %v714 = vld [vmem:[#allocation10 + $0x358] sm:$0xff]
    %v715 = vld [vmem:[#allocation10 + $0x360] sm:$0xff]
    %v716 = vld [vmem:[#allocation10 + $0x380] sm:$0xff]
    %v717 = vld [vmem:[#allocation10 + $0x388] sm:$0xff]
    %v718 = vld [vmem:[#allocation10 + $0x390] sm:$0xff]
    %v719 = vld [vmem:[#allocation10 + $0x398] sm:$0xff]
    %v720 = vld [vmem:[#allocation10 + $0x3a0] sm:$0xff]
    %v721 = vld [vmem:[#allocation10 + $0x3a8] sm:$0xff]
    %v722 = vld [vmem:[#allocation10 + $0x3b0] sm:$0xff]
    %v723 = vld [vmem:[#allocation10 + $0x3b8] sm:$0xff]
    %v724 = vld [vmem:[#allocation10 + $0x3d8] sm:$0xff]
    %v725 = vld [vmem:[#allocation10 + $0x3e0] sm:$0xff]
    %v726 = vld [vmem:[#allocation10 + $0x3e8] sm:$0xff]
    %v727 = vld [vmem:[#allocation10 + $0x3f0] sm:$0xff]
    %v728 = vld [vmem:[#allocation10 + $0x3f8] sm:$0xff]
    %v729 = vld [vmem:[#allocation10 + $0x400] sm:$0xff]
    %v730 = vld [vmem:[#allocation10 + $0x408] sm:$0xff]
    %v731 = vld [vmem:[#allocation10 + $0x410] sm:$0xff]
    %v732 = vld [vmem:[#allocation10 + $0x430] sm:$0xff]
    %v733 = vld [vmem:[#allocation10 + $0x438] sm:$0xff]
    %v734 = vld [vmem:[#allocation10 + $0x440] sm:$0xff]
    %v735 = vld [vmem:[#allocation10 + $0x448] sm:$0xff]
    %v736 = vld [vmem:[#allocation10 + $0x450] sm:$0xff]
    %v737 = vld [vmem:[#allocation10 + $0x458] sm:$0xff]
    %v738 = vld [vmem:[#allocation10 + $0x460] sm:$0xff]
    %v739 = vld [vmem:[#allocation10 + $0x468] sm:$0xff]
    %v740 = vld [vmem:[#allocation10 + $0x488] sm:$0xff]
    %v741 = vld [vmem:[#allocation10 + $0x490] sm:$0xff]
    %v742 = vld [vmem:[#allocation10 + $0x498] sm:$0xff]
    %v743 = vld [vmem:[#allocation10 + $0x4a0] sm:$0xff]
    %v744 = vld [vmem:[#allocation10 + $0x4a8] sm:$0xff]
    %v745 = vld [vmem:[#allocation10 + $0x4b0] sm:$0xff]
    %v746 = vld [vmem:[#allocation10 + $0x4b8] sm:$0xff]
    %v747 = vld [vmem:[#allocation10 + $0x4c0] sm:$0xff]
    %v748 = vld [vmem:[#allocation10 + $0x4e0] sm:$0xff]
    %v749 = vld [vmem:[#allocation10 + $0x4e8] sm:$0xff]
    %v750 = vld [vmem:[#allocation10 + $0x4f0] sm:$0xff]
    %v751 = vld [vmem:[#allocation10 + $0x4f8] sm:$0xff]
    %v752 = vld [vmem:[#allocation10 + $0x500] sm:$0xff]
    %v753 = vld [vmem:[#allocation10 + $0x508] sm:$0xff]
    %v754 = vld [vmem:[#allocation10 + $0x510] sm:$0xff]
    %v755 = vld [vmem:[#allocation10 + $0x518] sm:$0xff]
    %v756 = vld [vmem:[#allocation10 + $0x538] sm:$0xff]
    %v757 = vld [vmem:[#allocation10 + $0x540] sm:$0xff]
    %v758 = vld [vmem:[#allocation10 + $0x548] sm:$0xff]
    %v759 = vld [vmem:[#allocation10 + $0x550] sm:$0xff]
    %v760 = vld [vmem:[#allocation10 + $0x558] sm:$0xff]
    %v761 = vld [vmem:[#allocation10 + $0x560] sm:$0xff]
    %v762 = vld [vmem:[#allocation10 + $0x568] sm:$0xff]
    %v763 = vld [vmem:[#allocation10 + $0x570] sm:$0xff]
    %v764 = vld [vmem:[#allocation10 + $0x590] sm:$0xff]
    %v765 = vld [vmem:[#allocation10 + $0x598] sm:$0xff]
    %v766 = vld [vmem:[#allocation10 + $0x5a0] sm:$0xff]
    %v767 = vld [vmem:[#allocation10 + $0x5a8] sm:$0xff]
    %v768 = vld [vmem:[#allocation10 + $0x5b0] sm:$0xff]
    %v769 = vld [vmem:[#allocation10 + $0x5b8] sm:$0xff]
    %v770 = vld [vmem:[#allocation10 + $0x5c0] sm:$0xff]
    %v771 = vld [vmem:[#allocation10 + $0x5c8] sm:$0xff]
    %v772 = vld [vmem:[#allocation10 + $0x5e8] sm:$0xff]
    %v773 = vld [vmem:[#allocation10 + $0x5f0] sm:$0xff]
    %v774 = vld [vmem:[#allocation10 + $0x5f8] sm:$0xff]
    %v775 = vld [vmem:[#allocation10 + $0x600] sm:$0xff]
    %v776 = vld [vmem:[#allocation10 + $0x608] sm:$0xff]
    %v777 = vld [vmem:[#allocation10 + $0x610] sm:$0xff]
    %v778 = vld [vmem:[#allocation10 + $0x618] sm:$0xff]
    %v779 = vld [vmem:[#allocation10 + $0x620] sm:$0xff]
    %v780 = vld [vmem:[#allocation10 + $0x640] sm:$0xff]
    %v781 = vld [vmem:[#allocation10 + $0x648] sm:$0xff]
    %v782 = vld [vmem:[#allocation10 + $0x650] sm:$0xff]
    %v783 = vld [vmem:[#allocation10 + $0x658] sm:$0xff]
    %v784 = vld [vmem:[#allocation10 + $0x660] sm:$0xff]
    %v785 = vld [vmem:[#allocation10 + $0x668] sm:$0xff]
    %v786 = vld [vmem:[#allocation10 + $0x670] sm:$0xff]
    %v787 = vld [vmem:[#allocation10 + $0x678] sm:$0xff]
    %v788 = vld [vmem:[#allocation10 + $0x698] sm:$0xff]
    %v789 = vld [vmem:[#allocation10 + $0x6a0] sm:$0xff]
    %v790 = vld [vmem:[#allocation10 + $0x6a8] sm:$0xff]
    %v791 = vld [vmem:[#allocation10 + $0x6b0] sm:$0xff]
    %v792 = vld [vmem:[#allocation10 + $0x6b8] sm:$0xff]
    %v793 = vld [vmem:[#allocation10 + $0x6c0] sm:$0xff]
    %v794 = vld [vmem:[#allocation10 + $0x6c8] sm:$0xff]
    %v795 = vld [vmem:[#allocation10 + $0x6d0] sm:$0xff]
    %v796 = vld [vmem:[#allocation10 + $0x6f0] sm:$0xff]
    %v797 = vld [vmem:[#allocation10 + $0x6f8] sm:$0xff]
    %v798 = vld [vmem:[#allocation10 + $0x700] sm:$0xff]
    %v799 = vld [vmem:[#allocation10 + $0x708] sm:$0xff]
    %v800 = vld [vmem:[#allocation10 + $0x710] sm:$0xff]
    %v801 = vld [vmem:[#allocation10 + $0x718] sm:$0xff]
    %v802 = vld [vmem:[#allocation10 + $0x720] sm:$0xff]
    %v803 = vld [vmem:[#allocation10 + $0x728] sm:$0xff]
    %v804 = vld [vmem:[#allocation10 + $0x748] sm:$0xff]
    %v805 = vld [vmem:[#allocation10 + $0x750] sm:$0xff]
    %v806 = vld [vmem:[#allocation10 + $0x758] sm:$0xff]
    %v807 = vld [vmem:[#allocation10 + $0x760] sm:$0xff]
    %v808 = vld [vmem:[#allocation10 + $0x768] sm:$0xff]
    %v809 = vld [vmem:[#allocation10 + $0x770] sm:$0xff]
    %v810 = vld [vmem:[#allocation10 + $0x778] sm:$0xff]
    %v811 = vld [vmem:[#allocation10 + $0x780] sm:$0xff]
    %v812 = vld [vmem:[#allocation10 + $0x7a0] sm:$0xff]
    %v813 = vld [vmem:[#allocation10 + $0x7a8] sm:$0xff]
    %v814 = vld [vmem:[#allocation10 + $0x7b0] sm:$0xff]
    %v815 = vld [vmem:[#allocation10 + $0x7b8] sm:$0xff]
    %v816 = vld [vmem:[#allocation10 + $0x7c0] sm:$0xff]
    %v817 = vld [vmem:[#allocation10 + $0x7c8] sm:$0xff]
    %v818 = vld [vmem:[#allocation10 + $0x7d0] sm:$0xff]
    %v819 = vld [vmem:[#allocation10 + $0x7d8] sm:$0xff]
    %v820 = vld [vmem:[#allocation10 + $0x7f8] sm:$0xff]
    %v821 = vld [vmem:[#allocation10 + $0x800] sm:$0xff]
    %v822 = vld [vmem:[#allocation10 + $0x808] sm:$0xff]
    %v823 = vld [vmem:[#allocation10 + $0x810] sm:$0xff]
    %v824 = vld [vmem:[#allocation10 + $0x818] sm:$0xff]
    %v825 = vld [vmem:[#allocation10 + $0x820] sm:$0xff]
    %v826 = vld [vmem:[#allocation10 + $0x828] sm:$0xff]
    %v827 = vld [vmem:[#allocation10 + $0x830] sm:$0xff]
    %v828 = vld [vmem:[#allocation10 + $0x850] sm:$0xff]
    %v829 = vld [vmem:[#allocation10 + $0x858] sm:$0xff]
    %v830 = vld [vmem:[#allocation10 + $0x860] sm:$0xff]
    %v831 = vld [vmem:[#allocation10 + $0x868] sm:$0xff]
    %v832 = vld [vmem:[#allocation10 + $0x870] sm:$0xff]
    %v833 = vld [vmem:[#allocation10 + $0x878] sm:$0xff]
    %v834 = vld [vmem:[#allocation10 + $0x880] sm:$0xff]
    %v835 = vld [vmem:[#allocation10 + $0x888] sm:$0xff]
    %v836 = vld [vmem:[#allocation10 + $0x8a8] sm:$0xff]
    %v837 = vld [vmem:[#allocation10 + $0x8b0] sm:$0xff]
    %v838 = vld [vmem:[#allocation10 + $0x8b8] sm:$0xff]
    %v839 = vld [vmem:[#allocation10 + $0x8c0] sm:$0xff]
    %v840 = vld [vmem:[#allocation10 + $0x8c8] sm:$0xff]
    %v841 = vld [vmem:[#allocation10 + $0x8d0] sm:$0xff]
    %v842 = vld [vmem:[#allocation10 + $0x8d8] sm:$0xff]
    %v843 = vld [vmem:[#allocation10 + $0x8e0] sm:$0xff]
    %v844 = vld [vmem:[#allocation10 + $0x900] sm:$0xff]
    %v845 = vld [vmem:[#allocation10 + $0x908] sm:$0xff]
    %v846 = vld [vmem:[#allocation10 + $0x910] sm:$0xff]
    %v847 = vld [vmem:[#allocation10 + $0x918] sm:$0xff]
    %v848 = vld [vmem:[#allocation10 + $0x920] sm:$0xff]
    %v849 = vld [vmem:[#allocation10 + $0x928] sm:$0xff]
    %v850 = vld [vmem:[#allocation10 + $0x930] sm:$0xff]
    %v851 = vld [vmem:[#allocation10 + $0x938] sm:$0xff]
    %v852 = vld [vmem:[#allocation10 + $0x958] sm:$0xff]
    %v853 = vld [vmem:[#allocation10 + $0x960] sm:$0xff]
    %v854 = vld [vmem:[#allocation10 + $0x968] sm:$0xff]
    %v855 = vld [vmem:[#allocation10 + $0x970] sm:$0xff]
    %v856 = vld [vmem:[#allocation10 + $0x978] sm:$0xff]
    %v857 = vld [vmem:[#allocation10 + $0x980] sm:$0xff]
    %v858 = vld [vmem:[#allocation10 + $0x988] sm:$0xff]
    %v859 = vld [vmem:[#allocation10 + $0x990] sm:$0xff]
    %v860 = vld [vmem:[#allocation10 + $0x9b0] sm:$0xff]
    %v861 = vld [vmem:[#allocation10 + $0x9b8] sm:$0xff]
    %v862 = vld [vmem:[#allocation10 + $0x9c0] sm:$0xff]
    %v863 = vld [vmem:[#allocation10 + $0x9c8] sm:$0xff]
    %v864 = vld [vmem:[#allocation10 + $0x9d0] sm:$0xff]
    %v865 = vld [vmem:[#allocation10 + $0x9d8] sm:$0xff]
    %v866 = vld [vmem:[#allocation10 + $0x9e0] sm:$0xff]
    %v867 = vld [vmem:[#allocation10 + $0x9e8] sm:$0xff]
    %v868 = vld [vmem:[#allocation10 + $0xa08] sm:$0xff]
    %v869 = vld [vmem:[#allocation10 + $0xa10] sm:$0xff]
    %v870 = vld [vmem:[#allocation10 + $0xa18] sm:$0xff]
    %v871 = vld [vmem:[#allocation10 + $0xa20] sm:$0xff]
    %v872 = vld [vmem:[#allocation10 + $0xa28] sm:$0xff]
    %v873 = vld [vmem:[#allocation10 + $0xa30] sm:$0xff]
    %v874 = vld [vmem:[#allocation10 + $0xa38] sm:$0xff]
    %v875 = vld [vmem:[#allocation10 + $0xa40] sm:$0xff]
    %v876 = vld [vmem:[#allocation10 + $0xa60] sm:$0xff]
    %v877 = vld [vmem:[#allocation10 + $0xa68] sm:$0xff]
    %v878 = vld [vmem:[#allocation10 + $0xa70] sm:$0xff]
    %v879 = vld [vmem:[#allocation10 + $0xa78] sm:$0xff]
    %v880 = vld [vmem:[#allocation10 + $0xa80] sm:$0xff]
    %v881 = vld [vmem:[#allocation10 + $0xa88] sm:$0xff]
    %v882 = vld [vmem:[#allocation10 + $0xa90] sm:$0xff]
    %v883 = vld [vmem:[#allocation10 + $0xa98] sm:$0xff]
    %v884 = vld [vmem:[#allocation10 + $0xab8] sm:$0xff]
    %v885 = vld [vmem:[#allocation10 + $0xac0] sm:$0xff]
    %v886 = vld [vmem:[#allocation10 + $0xac8] sm:$0xff]
    %v887 = vld [vmem:[#allocation10 + $0xad0] sm:$0xff]
    %v888 = vld [vmem:[#allocation10 + $0xad8] sm:$0xff]
    %v889 = vld [vmem:[#allocation10 + $0xae0] sm:$0xff]
    %v890 = vld [vmem:[#allocation10 + $0xae8] sm:$0xff]
    %v891 = vld [vmem:[#allocation10 + $0xaf0] sm:$0xff]
    %v892 = vld [vmem:[#allocation11 + $0x6] sm:$0xff]
    %v894 = vperm.slane %v892, 0
    %v895 = vperm.slane %v892, 1
    %v896 = vperm.slane %v892, 2
    %v897 = vperm.slane %v892, 3
    %v898 = vperm.slane %v892, 4
    %v899 = vperm.slane %v892, 5
    %v900 = vperm.slane %v892, 6
    %v901 = vperm.slane %v892, 7
    %910 = vmatpush.msra.mxu0 %v756
    %911 = vmatpush.msra.mxu0 %v748
    %912 = vmatpush.msra.mxu0 %v740
    %913 = vmatpush.msra.mxu0 %v732
    %914 = vmatpush.msra.mxu0 %v724
    %915 = vmatpush.msra.mxu0 %v716
    %916 = vmatpush.msra.mxu0 %v708
    %917 = vmatpush.msra.mxu0 %v700
    %918 = vmatpush.msra.mxu0 %v692
    %919 = vmatpush.msra.mxu0 %v684
    %920 = vmatpush.msra.mxu0 %v676
    %921 = vmatpush.msra.mxu0 %v668
    %922 = vmatpush.msra.mxu0 %v660
    %923 = vmatpush.msra.mxu0 %v652
    %924 = vmatpush.msra.mxu0 %v644
    %925 = vmatpush.msra.mxu0 %v636
    %926 = vmatmul.f32.gmra.mxu0 %v634
    %v927 = vpop.f32.mrf.mxu0
    %v928 = vadd.f32 %v894, %v927
    %929 = vdwg.mxu0
    %930 = vmatpush.msra.mxu0 %v884
    %931 = vmatpush.msra.mxu0 %v876
    %932 = vmatpush.msra.mxu0 %v868
    %933 = vmatpush.msra.mxu0 %v860
    %934 = vmatpush.msra.mxu0 %v852
    %935 = vmatpush.msra.mxu0 %v844
    %936 = vmatpush.msra.mxu0 %v836
    %937 = vmatpush.msra.mxu0 %v828
    %938 = vmatpush.msra.mxu0 %v820
    %939 = vmatpush.msra.mxu0 %v812
    %940 = vmatpush.msra.mxu0 %v804
    %941 = vmatpush.msra.mxu0 %v796
    %942 = vmatpush.msra.mxu0 %v788
    %943 = vmatpush.msra.mxu0 %v780
    %944 = vmatpush.msra.mxu0 %v772
    %945 = vmatpush.msra.mxu0 %v764
    %946 = vmatmul.f32.gmra.mxu0 %v635
    %v947 = vpop.f32.mrf.mxu0
    %v948 = vadd.f32 %v928, %v947
    %949 = vdwg.mxu0
    %950 = vmatpush.msra.mxu0 %v757
    %951 = vmatpush.msra.mxu0 %v749
    %952 = vmatpush.msra.mxu0 %v741
    %953 = vmatpush.msra.mxu0 %v733
    %954 = vmatpush.msra.mxu0 %v725
    %955 = vmatpush.msra.mxu0 %v717
    %956 = vmatpush.msra.mxu0 %v709
    %957 = vmatpush.msra.mxu0 %v701
    %958 = vmatpush.msra.mxu0 %v693
    %959 = vmatpush.msra.mxu0 %v685
    %960 = vmatpush.msra.mxu0 %v677
    %961 = vmatpush.msra.mxu0 %v669
    %962 = vmatpush.msra.mxu0 %v661
    %963 = vmatpush.msra.mxu0 %v653
    %964 = vmatpush.msra.mxu0 %v645
    %965 = vmatpush.msra.mxu0 %v637
    %966 = vmatmul.f32.gmra.mxu0 %v634
    %v967 = vpop.f32.mrf.mxu0
    %v968 = vadd.f32 %v895, %v967
    %969 = vdwg.mxu0
    %970 = vmatpush.msra.mxu0 %v885
    %971 = vmatpush.msra.mxu0 %v877
    %972 = vmatpush.msra.mxu0 %v869
    %973 = vmatpush.msra.mxu0 %v861
    %974 = vmatpush.msra.mxu0 %v853
    %975 = vmatpush.msra.mxu0 %v845
    %976 = vmatpush.msra.mxu0 %v837
    %977 = vmatpush.msra.mxu0 %v829
    %978 = vmatpush.msra.mxu0 %v821
    %979 = vmatpush.msra.mxu0 %v813
    %980 = vmatpush.msra.mxu0 %v805
    %981 = vmatpush.msra.mxu0 %v797
    %982 = vmatpush.msra.mxu0 %v789
    %983 = vmatpush.msra.mxu0 %v781
    %984 = vmatpush.msra.mxu0 %v773
    %985 = vmatpush.msra.mxu0 %v765
    %986 = vmatmul.f32.gmra.mxu0 %v635
    %v987 = vpop.f32.mrf.mxu0
    %v988 = vadd.f32 %v968, %v987
    %989 = vdwg.mxu0
    %990 = vmatpush.msra.mxu0 %v758
    %991 = vmatpush.msra.mxu0 %v750
    %992 = vmatpush.msra.mxu0 %v742
    %993 = vmatpush.msra.mxu0 %v734
    %994 = vmatpush.msra.mxu0 %v726
    %995 = vmatpush.msra.mxu0 %v718
    %996 = vmatpush.msra.mxu0 %v710
    %997 = vmatpush.msra.mxu0 %v702
    %998 = vmatpush.msra.mxu0 %v694
    %999 = vmatpush.msra.mxu0 %v686
    %1000 = vmatpush.msra.mxu0 %v678
    %1001 = vmatpush.msra.mxu0 %v670
    %1002 = vmatpush.msra.mxu0 %v662
    %1003 = vmatpush.msra.mxu0 %v654
    %1004 = vmatpush.msra.mxu0 %v646
    %1005 = vmatpush.msra.mxu0 %v638
    %1006 = vmatmul.f32.gmra.mxu0 %v634
    %v1007 = vpop.f32.mrf.mxu0
    %v1008 = vadd.f32 %v896, %v1007
    %1009 = vdwg.mxu0
    %1010 = vmatpush.msra.mxu0 %v886
    %1011 = vmatpush.msra.mxu0 %v878
    %1012 = vmatpush.msra.mxu0 %v870
    %1013 = vmatpush.msra.mxu0 %v862
    %1014 = vmatpush.msra.mxu0 %v854
    %1015 = vmatpush.msra.mxu0 %v846
    %1016 = vmatpush.msra.mxu0 %v838
    %1017 = vmatpush.msra.mxu0 %v830
    %1018 = vmatpush.msra.mxu0 %v822
    %1019 = vmatpush.msra.mxu0 %v814
    %1020 = vmatpush.msra.mxu0 %v806
    %1021 = vmatpush.msra.mxu0 %v798
    %1022 = vmatpush.msra.mxu0 %v790
    %1023 = vmatpush.msra.mxu0 %v782
    %1024 = vmatpush.msra.mxu0 %v774
    %1025 = vmatpush.msra.mxu0 %v766
    %1026 = vmatmul.f32.gmra.mxu0 %v635
    %v1027 = vpop.f32.mrf.mxu0
    %v1028 = vadd.f32 %v1008, %v1027
    %1029 = vdwg.mxu0
    %1030 = vmatpush.msra.mxu0 %v759
    %1031 = vmatpush.msra.mxu0 %v751
    %1032 = vmatpush.msra.mxu0 %v743
    %1033 = vmatpush.msra.mxu0 %v735
    %1034 = vmatpush.msra.mxu0 %v727
    %1035 = vmatpush.msra.mxu0 %v719
    %1036 = vmatpush.msra.mxu0 %v711
    %1037 = vmatpush.msra.mxu0 %v703
    %1038 = vmatpush.msra.mxu0 %v695
    %1039 = vmatpush.msra.mxu0 %v687
    %1040 = vmatpush.msra.mxu0 %v679
    %1041 = vmatpush.msra.mxu0 %v671
    %1042 = vmatpush.msra.mxu0 %v663
    %1043 = vmatpush.msra.mxu0 %v655
    %1044 = vmatpush.msra.mxu0 %v647
    %1045 = vmatpush.msra.mxu0 %v639
    %1046 = vmatmul.f32.gmra.mxu0 %v634
    %v1047 = vpop.f32.mrf.mxu0
    %v1048 = vadd.f32 %v897, %v1047
    %1049 = vdwg.mxu0
    %1050 = vmatpush.msra.mxu0 %v887
    %1051 = vmatpush.msra.mxu0 %v879
    %1052 = vmatpush.msra.mxu0 %v871
    %1053 = vmatpush.msra.mxu0 %v863
    %1054 = vmatpush.msra.mxu0 %v855
    %1055 = vmatpush.msra.mxu0 %v847
    %1056 = vmatpush.msra.mxu0 %v839
    %1057 = vmatpush.msra.mxu0 %v831
    %1058 = vmatpush.msra.mxu0 %v823
    %1059 = vmatpush.msra.mxu0 %v815
    %1060 = vmatpush.msra.mxu0 %v807
    %1061 = vmatpush.msra.mxu0 %v799
    %1062 = vmatpush.msra.mxu0 %v791
    %1063 = vmatpush.msra.mxu0 %v783
    %1064 = vmatpush.msra.mxu0 %v775
    %1065 = vmatpush.msra.mxu0 %v767
    %1066 = vmatmul.f32.gmra.mxu0 %v635
    %v1067 = vpop.f32.mrf.mxu0
    %v1068 = vadd.f32 %v1048, %v1067
    %1069 = vdwg.mxu0
    %1070 = vmatpush.msra.mxu0 %v760
    %1071 = vmatpush.msra.mxu0 %v752
    %1072 = vmatpush.msra.mxu0 %v744
    %1073 = vmatpush.msra.mxu0 %v736
    %1074 = vmatpush.msra.mxu0 %v728
    %1075 = vmatpush.msra.mxu0 %v720
    %1076 = vmatpush.msra.mxu0 %v712
    %1077 = vmatpush.msra.mxu0 %v704
    %1078 = vmatpush.msra.mxu0 %v696
    %1079 = vmatpush.msra.mxu0 %v688
    %1080 = vmatpush.msra.mxu0 %v680
    %1081 = vmatpush.msra.mxu0 %v672
    %1082 = vmatpush.msra.mxu0 %v664
    %1083 = vmatpush.msra.mxu0 %v656
    %1084 = vmatpush.msra.mxu0 %v648
    %1085 = vmatpush.msra.mxu0 %v640
    %1086 = vmatmul.f32.gmra.mxu0 %v634
    %v1087 = vpop.f32.mrf.mxu0
    %v1088 = vadd.f32 %v898, %v1087
    %1089 = vdwg.mxu0
    %1090 = vmatpush.msra.mxu0 %v888
    %1091 = vmatpush.msra.mxu0 %v880
    %1092 = vmatpush.msra.mxu0 %v872
    %1093 = vmatpush.msra.mxu0 %v864
    %1094 = vmatpush.msra.mxu0 %v856
    %1095 = vmatpush.msra.mxu0 %v848
    %1096 = vmatpush.msra.mxu0 %v840
    %1097 = vmatpush.msra.mxu0 %v832
    %1098 = vmatpush.msra.mxu0 %v824
    %1099 = vmatpush.msra.mxu0 %v816
    %1100 = vmatpush.msra.mxu0 %v808
    %1101 = vmatpush.msra.mxu0 %v800
    %1102 = vmatpush.msra.mxu0 %v792
    %1103 = vmatpush.msra.mxu0 %v784
    %1104 = vmatpush.msra.mxu0 %v776
    %1105 = vmatpush.msra.mxu0 %v768
    %1106 = vmatmul.f32.gmra.mxu0 %v635
    %v1107 = vpop.f32.mrf.mxu0
    %v1108 = vadd.f32 %v1088, %v1107
    %1109 = vdwg.mxu0
    %1110 = vmatpush.msra.mxu0 %v761
    %1111 = vmatpush.msra.mxu0 %v753
    %1112 = vmatpush.msra.mxu0 %v745
    %1113 = vmatpush.msra.mxu0 %v737
    %1114 = vmatpush.msra.mxu0 %v729
    %1115 = vmatpush.msra.mxu0 %v721
    %1116 = vmatpush.msra.mxu0 %v713
    %1117 = vmatpush.msra.mxu0 %v705
    %1118 = vmatpush.msra.mxu0 %v697
    %1119 = vmatpush.msra.mxu0 %v689
    %1120 = vmatpush.msra.mxu0 %v681
    %1121 = vmatpush.msra.mxu0 %v673
    %1122 = vmatpush.msra.mxu0 %v665
    %1123 = vmatpush.msra.mxu0 %v657
    %1124 = vmatpush.msra.mxu0 %v649
    %1125 = vmatpush.msra.mxu0 %v641
    %1126 = vmatmul.f32.gmra.mxu0 %v634
    %v1127 = vpop.f32.mrf.mxu0
    %v1128 = vadd.f32 %v899, %v1127
    %1129 = vdwg.mxu0
    %1130 = vmatpush.msra.mxu0 %v889
    %1131 = vmatpush.msra.mxu0 %v881
    %1132 = vmatpush.msra.mxu0 %v873
    %1133 = vmatpush.msra.mxu0 %v865
    %1134 = vmatpush.msra.mxu0 %v857
    %1135 = vmatpush.msra.mxu0 %v849
    %1136 = vmatpush.msra.mxu0 %v841
    %1137 = vmatpush.msra.mxu0 %v833
    %1138 = vmatpush.msra.mxu0 %v825
    %1139 = vmatpush.msra.mxu0 %v817
    %1140 = vmatpush.msra.mxu0 %v809
    %1141 = vmatpush.msra.mxu0 %v801
    %1142 = vmatpush.msra.mxu0 %v793
    %1143 = vmatpush.msra.mxu0 %v785
    %1144 = vmatpush.msra.mxu0 %v777
    %1145 = vmatpush.msra.mxu0 %v769
    %1146 = vmatmul.f32.gmra.mxu0 %v635
    %v1147 = vpop.f32.mrf.mxu0
    %v1148 = vadd.f32 %v1128, %v1147
    %1149 = vdwg.mxu0
    %1150 = vmatpush.msra.mxu0 %v762
    %1151 = vmatpush.msra.mxu0 %v754
    %1152 = vmatpush.msra.mxu0 %v746
    %1153 = vmatpush.msra.mxu0 %v738
    %1154 = vmatpush.msra.mxu0 %v730
    %1155 = vmatpush.msra.mxu0 %v722
    %1156 = vmatpush.msra.mxu0 %v714
    %1157 = vmatpush.msra.mxu0 %v706
    %1158 = vmatpush.msra.mxu0 %v698
    %1159 = vmatpush.msra.mxu0 %v690
    %1160 = vmatpush.msra.mxu0 %v682
    %1161 = vmatpush.msra.mxu0 %v674
    %1162 = vmatpush.msra.mxu0 %v666
    %1163 = vmatpush.msra.mxu0 %v658
    %1164 = vmatpush.msra.mxu0 %v650
    %1165 = vmatpush.msra.mxu0 %v642
    %1166 = vmatmul.f32.gmra.mxu0 %v634
    %v1167 = vpop.f32.mrf.mxu0
    %v1168 = vadd.f32 %v900, %v1167
    %1169 = vdwg.mxu0
    %1170 = vmatpush.msra.mxu0 %v890
    %1171 = vmatpush.msra.mxu0 %v882
    %1172 = vmatpush.msra.mxu0 %v874
    %1173 = vmatpush.msra.mxu0 %v866
    %1174 = vmatpush.msra.mxu0 %v858
    %1175 = vmatpush.msra.mxu0 %v850
    %1176 = vmatpush.msra.mxu0 %v842
    %1177 = vmatpush.msra.mxu0 %v834
    %1178 = vmatpush.msra.mxu0 %v826
    %1179 = vmatpush.msra.mxu0 %v818
    %1180 = vmatpush.msra.mxu0 %v810
    %1181 = vmatpush.msra.mxu0 %v802
    %1182 = vmatpush.msra.mxu0 %v794
    %1183 = vmatpush.msra.mxu0 %v786
    %1184 = vmatpush.msra.mxu0 %v778
    %1185 = vmatpush.msra.mxu0 %v770
    %1186 = vmatmul.f32.gmra.mxu0 %v635
    %v1187 = vpop.f32.mrf.mxu0
    %v1188 = vadd.f32 %v1168, %v1187
    %1189 = vdwg.mxu0
    %1190 = vmatpush.msra.mxu0 %v763
    %1191 = vmatpush.msra.mxu0 %v755
    %1192 = vmatpush.msra.mxu0 %v747
    %1193 = vmatpush.msra.mxu0 %v739
    %1194 = vmatpush.msra.mxu0 %v731
    %1195 = vmatpush.msra.mxu0 %v723
    %1196 = vmatpush.msra.mxu0 %v715
    %1197 = vmatpush.msra.mxu0 %v707
    %1198 = vmatpush.msra.mxu0 %v699
    %1199 = vmatpush.msra.mxu0 %v691
    %1200 = vmatpush.msra.mxu0 %v683
    %1201 = vmatpush.msra.mxu0 %v675
    %1202 = vmatpush.msra.mxu0 %v667
    %1203 = vmatpush.msra.mxu0 %v659
    %1204 = vmatpush.msra.mxu0 %v651
    %1205 = vmatpush.msra.mxu0 %v643
    %1206 = vmatmul.f32.gmra.mxu0 %v634
    %v1207 = vpop.f32.mrf.mxu0
    %v1208 = vadd.f32 %v901, %v1207
    %1209 = vdwg.mxu0
    %1210 = vmatpush.msra.mxu0 %v891
    %1211 = vmatpush.msra.mxu0 %v883
    %1212 = vmatpush.msra.mxu0 %v875
    %1213 = vmatpush.msra.mxu0 %v867
    %1214 = vmatpush.msra.mxu0 %v859
    %1215 = vmatpush.msra.mxu0 %v851
    %1216 = vmatpush.msra.mxu0 %v843
    %1217 = vmatpush.msra.mxu0 %v835
    %1218 = vmatpush.msra.mxu0 %v827
    %1219 = vmatpush.msra.mxu0 %v819
    %1220 = vmatpush.msra.mxu0 %v811
    %1221 = vmatpush.msra.mxu0 %v803
    %1222 = vmatpush.msra.mxu0 %v795
    %1223 = vmatpush.msra.mxu0 %v787
    %1224 = vmatpush.msra.mxu0 %v779
    %1225 = vmatpush.msra.mxu0 %v771
    %1226 = vmatmul.f32.gmra.mxu0 %v635
    %v1227 = vpop.f32.mrf.mxu0
    %v1228 = vadd.f32 %v1208, %v1227
    %1229 = vdwg.mxu0
    %v1230 = vld [vmem:[#allocation5] sm:$0xff]
    %v1231 = vld [vmem:[#allocation5 + $0x18] sm:$0xff]
    %v1232 = vld [vmem:[#allocation5 + $0x30] sm:$0xff]
    %v1233 = vld [vmem:[#allocation5 + $0x48] sm:$0xff]
    %vm1234 = vcmask 261120
    %v1235 = vsel %vm1234, %v114, 0
    %1237 = vmatpush.msra.mxu0 0.0
    %1238 = vmatpush.msra.mxu0 0.0
    %1239 = vmatpush.msra.mxu0 0.0
    %1240 = vmatpush.msra.mxu0 0.0
    %1241 = vmatpush.msra.mxu0 0.0
    %1242 = vmatpush.msra.mxu0 0.0
    %1243 = vmatpush.msra.mxu0 0.0
    %1244 = vmatpush.msra.mxu0 0.0
    %1245 = vmatpush.msra.mxu0 0.0
    %1246 = vmatpush.msra.mxu0 0.0
    %1247 = vmatpush.msra.mxu0 0.0
    %1248 = vmatpush.msra.mxu0 0.0
    %1249 = vmatpush.msra.mxu0 %v1233
    %1250 = vmatpush.msra.mxu0 %v1232
    %1251 = vmatpush.msra.mxu0 %v1231
    %1252 = vmatpush.msra.mxu0 %v1230
    %1253 = vmatmul.f32.gmra.mxu0 %v1235
    %v1254 = vpop.f32.mrf.mxu0
    %v1255 = vadd.f32 %v948, %v1254
    %1256 = vdwg.mxu0
    %v1257 = vsel %vm1234, %v1255, 0.0
    %v1258 = vrot.slane %v1257, 4
    %v1259 = vadd.f32 %v1257, %v1258
    %v1260 = vrot.slane %v1259, 2
    %v1261 = vadd.f32 %v1259, %v1260
    %v1262 = vrot.slane %v1261, 1
    %v1263 = vadd.f32 %v1261, %v1262
    %v1264 = vrcp.pop 8.0
    %v1265 = vmul.f32 8.0, %v1264
    %v1266 = vsub.f32 1.0, %v1265
    %v1267 = vmul.f32 %v1264, %v1266
    %v1268 = vadd.f32 %v1264, %v1267
    %vm1269 = vweird.f32 %v1264
    %v1270 = vsel %vm1269, %v1264, %v1268
    %v1271 = vmul.f32 %v1263, %v1270
    %v1272 = vmul.f32 %v1255, %v1255
    %v1273 = vsel %vm1234, %v1272, 0.0
    %v1274 = vrot.slane %v1273, 4
    %v1275 = vadd.f32 %v1273, %v1274
    %v1276 = vrot.slane %v1275, 2
    %v1277 = vadd.f32 %v1275, %v1276
    %v1278 = vrot.slane %v1277, 1
    %v1279 = vadd.f32 %v1277, %v1278
    %v1280 = vmul.f32 %v1279, %v1270
    %v1281 = vmul.f32 %v1271, %v1271
    %v1282 = vsub.f32 %v1280, %v1281
    %v1283 = vmax.f32 %v1282, 0.0
    %v1284 = vld [vmem:[#allocation11 + $0xe] sm:$0x1]
    %v1285 = vld [vmem:[#allocation11 + $0x16] sm:$0x1]
    %v1286 = vsub.f32 %v1255, %v1271
    %v1287 = vadd.f32 %v1283, 1e-05
    %v1288 = vrsqrt.pop %v1287
    %v1289 = vmul.f32 %v1288, %v1287
    %v1290 = vmul.f32 %v1289, %v1288
    %v1291 = vmul.f32 0.5, %v1290
    %v1292 = vsub.f32 1.5, %v1291
    %v1293 = vmul.f32 %v1288, %v1292
    %vm1294 = vweird.f32 %v1287
    %vm1295 = vweird.f32 %v1288
    %vm1296 = vmor %vm1294, %vm1295
    %v1297 = vsel %vm1296, %v1288, %v1293
    %v1298 = vmul.f32 %v1286, %v1297
    %v1300 = vperm.slane %v1284, 0
    %v1302 = vmul.f32 %v1298, %v1300
    %v1304 = vperm.slane %v1285, 0
    %v1306 = vadd.f32 %v1302, %v1304
    %v1307 = vxor.u32 %v1306, 2147483648
    %v1308 = vmul.f32 %v1307, 1.442695
    %v1309 = vpow.pop %v1308
    %v1310 = vadd.f32 %v1309, 1.0
    %v1311 = vrcp.pop %v1310
    %v1312 = vmul.f32 %v1310, %v1311
    %v1313 = vsub.f32 1.0, %v1312
    %v1314 = vmul.f32 %v1311, %v1313
    %v1315 = vadd.f32 %v1311, %v1314
    %vm1316 = vweird.f32 %v1310
    %vm1317 = vweird.f32 %v1311
    %vm1318 = vmor %vm1316, %vm1317
    %v1319 = vsel %vm1318, %v1311, %v1315
    %v1320 = vand.u32 2147483647, %v1310
    %vm1321 = vcmp.eq.f32.partialorder %v1320, 8.507059e+37
    %v1322 = vand.u32 %v1310, 2147483648
    %v1323 = vor.u32 1.1754944e-38, %v1322
    %v1324 = vsel %vm1321, %v1323, %v1319
    %v1325 = vmul.f32 1.0, %v1324
    %v1326 = vmul.f32 %v1306, %v1325
    %v1327 = vld [vmem:[#allocation5 + $0x8] sm:$0xff]
    %v1328 = vld [vmem:[#allocation5 + $0x20] sm:$0xff]
    %v1329 = vld [vmem:[#allocation5 + $0x38] sm:$0xff]
    %v1330 = vld [vmem:[#allocation5 + $0x50] sm:$0xff]
    %v1332 = vsel %vm1234, %v1326, 0
    %1334 = vmatpush.msra.mxu0 0.0
    %1335 = vmatpush.msra.mxu0 0.0
    %1336 = vmatpush.msra.mxu0 0.0
    %1337 = vmatpush.msra.mxu0 0.0
    %1338 = vmatpush.msra.mxu0 0.0
    %1339 = vmatpush.msra.mxu0 0.0
    %1340 = vmatpush.msra.mxu0 0.0
    %1341 = vmatpush.msra.mxu0 0.0
    %1342 = vmatpush.msra.mxu0 0.0
    %1343 = vmatpush.msra.mxu0 0.0
    %1344 = vmatpush.msra.mxu0 0.0
    %1345 = vmatpush.msra.mxu0 0.0
    %1346 = vmatpush.msra.mxu0 %v1330
    %1347 = vmatpush.msra.mxu0 %v1329
    %1348 = vmatpush.msra.mxu0 %v1328
    %1349 = vmatpush.msra.mxu0 %v1327
    %1350 = vmatmul.f32.gmra.mxu0 %v1332
    %v1351 = vpop.f32.mrf.mxu0
    %v1352 = vadd.f32 0.0, %v1351
    %1353 = vdwg.mxu0
    %v1354 = vadd.f32 %v1352, %v988
    %vm1355 = vcmask 523264
    %v1356 = vsel %vm1355, %v1354, 0.0
    %v1357 = vrot.slane %v1356, 4
    %v1358 = vadd.f32 %v1356, %v1357
    %v1359 = vrot.slane %v1358, 2
    %v1360 = vadd.f32 %v1358, %v1359
    %v1361 = vrot.slane %v1360, 1
    %v1362 = vadd.f32 %v1360, %v1361
    %v1363 = vmul.f32 %v1362, %v1270
    %v1364 = vmul.f32 %v1354, %v1354
    %v1365 = vsel %vm1355, %v1364, 0.0
    %v1366 = vrot.slane %v1365, 4
    %v1367 = vadd.f32 %v1365, %v1366
    %v1368 = vrot.slane %v1367, 2
    %v1369 = vadd.f32 %v1367, %v1368
    %v1370 = vrot.slane %v1369, 1
    %v1371 = vadd.f32 %v1369, %v1370
    %v1372 = vmul.f32 %v1371, %v1270
    %v1373 = vmul.f32 %v1363, %v1363
    %v1374 = vsub.f32 %v1372, %v1373
    %v1375 = vmax.f32 %v1374, 0.0
    %v1376 = vld [vmem:[#allocation11 + $0xf] sm:$0x1]
    %v1377 = vld [vmem:[#allocation11 + $0x17] sm:$0x1]
    %v1378 = vsub.f32 %v1354, %v1363
    %v1379 = vadd.f32 %v1375, 1e-05
    %v1380 = vrsqrt.pop %v1379
    %v1381 = vmul.f32 %v1380, %v1379
    %v1382 = vmul.f32 %v1381, %v1380
    %v1383 = vmul.f32 0.5, %v1382
    %v1384 = vsub.f32 1.5, %v1383
    %v1385 = vmul.f32 %v1380, %v1384
    %vm1386 = vweird.f32 %v1379
    %vm1387 = vweird.f32 %v1380
    %vm1388 = vmor %vm1386, %vm1387
    %v1389 = vsel %vm1388, %v1380, %v1385
    %v1390 = vmul.f32 %v1378, %v1389
    %v1392 = vperm.slane %v1376, 0
    %v1394 = vmul.f32 %v1390, %v1392
    %v1396 = vperm.slane %v1377, 0
    %v1398 = vadd.f32 %v1394, %v1396
    %v1399 = vxor.u32 %v1398, 2147483648
    %v1400 = vmul.f32 %v1399, 1.442695
    %v1401 = vpow.pop %v1400
    %v1402 = vadd.f32 %v1401, 1.0
    %v1403 = vrcp.pop %v1402
    %v1404 = vmul.f32 %v1402, %v1403
    %v1405 = vsub.f32 1.0, %v1404
    %v1406 = vmul.f32 %v1403, %v1405
    %v1407 = vadd.f32 %v1403, %v1406
    %vm1408 = vweird.f32 %v1402
    %vm1409 = vweird.f32 %v1403
    %vm1410 = vmor %vm1408, %vm1409
    %v1411 = vsel %vm1410, %v1403, %v1407
    %v1412 = vand.u32 2147483647, %v1402
    %vm1413 = vcmp.eq.f32.partialorder %v1412, 8.507059e+37
    %v1414 = vand.u32 %v1402, 2147483648
    %v1415 = vor.u32 1.1754944e-38, %v1414
    %v1416 = vsel %vm1413, %v1415, %v1411
    %v1417 = vmul.f32 1.0, %v1416
    %v1418 = vmul.f32 %v1398, %v1417
    %v1419 = vld [vmem:[#allocation7] sm:$0xff]
    %v1420 = vld [vmem:[#allocation7 + $0x8] sm:$0xff]
    %v1421 = vld [vmem:[#allocation7 + $0x18] sm:$0xff]
    %v1422 = vld [vmem:[#allocation7 + $0x20] sm:$0xff]
    %v1423 = vld [vmem:[#allocation7 + $0x30] sm:$0xff]
    %v1424 = vld [vmem:[#allocation7 + $0x38] sm:$0xff]
    %v1425 = vld [vmem:[#allocation7 + $0x48] sm:$0xff]
    %v1426 = vld [vmem:[#allocation7 + $0x50] sm:$0xff]
    %v1427 = vld [vmem:[#allocation7 + $0x60] sm:$0xff]
    %v1428 = vld [vmem:[#allocation7 + $0x68] sm:$0xff]
    %v1429 = vld [vmem:[#allocation7 + $0x78] sm:$0xff]
    %v1430 = vld [vmem:[#allocation7 + $0x80] sm:$0xff]
    %v1431 = vld [vmem:[#allocation7 + $0x90] sm:$0xff]
    %v1432 = vld [vmem:[#allocation7 + $0x98] sm:$0xff]
    %v1433 = vld [vmem:[#allocation7 + $0xa8] sm:$0xff]
    %v1434 = vld [vmem:[#allocation7 + $0xb0] sm:$0xff]
    %v1436 = vsel %vm1355, %v1418, 0
    %1438 = vmatpush.msra.mxu0 0.0
    %1439 = vmatpush.msra.mxu0 0.0
    %1440 = vmatpush.msra.mxu0 0.0
    %1441 = vmatpush.msra.mxu0 0.0
    %1442 = vmatpush.msra.mxu0 0.0
    %1443 = vmatpush.msra.mxu0 0.0
    %1444 = vmatpush.msra.mxu0 0.0
    %1445 = vmatpush.msra.mxu0 0.0
    %1446 = vmatpush.msra.mxu0 %v1433
    %1447 = vmatpush.msra.mxu0 %v1431
    %1448 = vmatpush.msra.mxu0 %v1429
    %1449 = vmatpush.msra.mxu0 %v1427
    %1450 = vmatpush.msra.mxu0 %v1425
    %1451 = vmatpush.msra.mxu0 %v1423
    %1452 = vmatpush.msra.mxu0 %v1421
    %1453 = vmatpush.msra.mxu0 %v1419
    %1454 = vmatmul.f32.gmra.mxu0 %v1436
    %v1455 = vpop.f32.mrf.mxu0
    %v1456 = vadd.f32 0.0, %v1455
    %1457 = vdwg.mxu0
    %1458 = vmatpush.msra.mxu0 0.0
    %1459 = vmatpush.msra.mxu0 0.0
    %1460 = vmatpush.msra.mxu0 0.0
    %1461 = vmatpush.msra.mxu0 0.0
    %1462 = vmatpush.msra.mxu0 0.0
    %1463 = vmatpush.msra.mxu0 0.0
    %1464 = vmatpush.msra.mxu0 0.0
    %1465 = vmatpush.msra.mxu0 0.0
    %1466 = vmatpush.msra.mxu0 %v1434
    %1467 = vmatpush.msra.mxu0 %v1432
    %1468 = vmatpush.msra.mxu0 %v1430
    %1469 = vmatpush.msra.mxu0 %v1428
    %1470 = vmatpush.msra.mxu0 %v1426
    %1471 = vmatpush.msra.mxu0 %v1424
    %1472 = vmatpush.msra.mxu0 %v1422
    %1473 = vmatpush.msra.mxu0 %v1420
    %1474 = vmatmul.f32.gmra.mxu0 %v1436
    %v1475 = vpop.f32.mrf.mxu0
    %v1476 = vadd.f32 0.0, %v1475
    %1477 = vdwg.mxu0
    %v1478 = vadd.f32 %v1456, %v1028
    %v1479 = vrot.slane %v1478, 4
    %v1480 = vadd.f32 %v1478, %v1479
    %v1481 = vrot.slane %v1480, 2
    %v1482 = vadd.f32 %v1480, %v1481
    %v1483 = vrot.slane %v1482, 1
    %v1484 = vadd.f32 %v1482, %v1483
    %v1485 = vmul.f32 %v1484, %v1270
    %v1486 = vmul.f32 %v1478, %v1478
    %v1487 = vrot.slane %v1486, 4
    %v1488 = vadd.f32 %v1486, %v1487
    %v1489 = vrot.slane %v1488, 2
    %v1490 = vadd.f32 %v1488, %v1489
    %v1491 = vrot.slane %v1490, 1
    %v1492 = vadd.f32 %v1490, %v1491
    %v1493 = vmul.f32 %v1492, %v1270
    %v1494 = vmul.f32 %v1485, %v1485
    %v1495 = vsub.f32 %v1493, %v1494
    %v1496 = vmax.f32 %v1495, 0.0
    %v1497 = vld [vmem:[#allocation11 + $0x10] sm:$0x1]
    %v1498 = vld [vmem:[#allocation11 + $0x18] sm:$0x1]
    %v1499 = vsub.f32 %v1478, %v1485
    %v1500 = vadd.f32 %v1496, 1e-05
    %v1501 = vrsqrt.pop %v1500
    %v1502 = vmul.f32 %v1501, %v1500
    %v1503 = vmul.f32 %v1502, %v1501
    %v1504 = vmul.f32 0.5, %v1503
    %v1505 = vsub.f32 1.5, %v1504
    %v1506 = vmul.f32 %v1501, %v1505
    %vm1507 = vweird.f32 %v1500
    %vm1508 = vweird.f32 %v1501
    %vm1509 = vmor %vm1507, %vm1508
    %v1510 = vsel %vm1509, %v1501, %v1506
    %v1511 = vmul.f32 %v1499, %v1510
    %v1513 = vperm.slane %v1497, 0
    %v1515 = vmul.f32 %v1511, %v1513
    %v1517 = vperm.slane %v1498, 0
    %v1519 = vadd.f32 %v1515, %v1517
    %v1520 = vxor.u32 %v1519, 2147483648
    %v1521 = vmul.f32 %v1520, 1.442695
    %v1522 = vpow.pop %v1521
    %v1523 = vadd.f32 %v1522, 1.0
    %v1524 = vrcp.pop %v1523
    %v1525 = vmul.f32 %v1523, %v1524
    %v1526 = vsub.f32 1.0, %v1525
    %v1527 = vmul.f32 %v1524, %v1526
    %v1528 = vadd.f32 %v1524, %v1527
    %vm1529 = vweird.f32 %v1523
    %vm1530 = vweird.f32 %v1524
    %vm1531 = vmor %vm1529, %vm1530
    %v1532 = vsel %vm1531, %v1524, %v1528
    %v1533 = vand.u32 2147483647, %v1523
    %vm1534 = vcmp.eq.f32.partialorder %v1533, 8.507059e+37
    %v1535 = vand.u32 %v1523, 2147483648
    %v1536 = vor.u32 1.1754944e-38, %v1535
    %v1537 = vsel %vm1534, %v1536, %v1532
    %v1538 = vmul.f32 1.0, %v1537
    %v1539 = vmul.f32 %v1519, %v1538
    %v1540 = vld [vmem:[#allocation8] sm:$0xff]
    %v1541 = vld [vmem:[#allocation8 + $0x8] sm:$0xff]
    %v1542 = vld [vmem:[#allocation8 + $0x10] sm:$0xff]
    %v1543 = vld [vmem:[#allocation8 + $0x20] sm:$0xff]
    %v1544 = vld [vmem:[#allocation8 + $0x28] sm:$0xff]
    %v1545 = vld [vmem:[#allocation8 + $0x30] sm:$0xff]
    %v1546 = vld [vmem:[#allocation8 + $0x40] sm:$0xff]
    %v1547 = vld [vmem:[#allocation8 + $0x48] sm:$0xff]
    %v1548 = vld [vmem:[#allocation8 + $0x50] sm:$0xff]
    %v1549 = vld [vmem:[#allocation8 + $0x60] sm:$0xff]
    %v1550 = vld [vmem:[#allocation8 + $0x68] sm:$0xff]
    %v1551 = vld [vmem:[#allocation8 + $0x70] sm:$0xff]
    %v1552 = vld [vmem:[#allocation8 + $0x80] sm:$0xff]
    %v1553 = vld [vmem:[#allocation8 + $0x88] sm:$0xff]
    %v1554 = vld [vmem:[#allocation8 + $0x90] sm:$0xff]
    %v1555 = vld [vmem:[#allocation8 + $0xa0] sm:$0xff]
    %v1556 = vld [vmem:[#allocation8 + $0xa8] sm:$0xff]
    %v1557 = vld [vmem:[#allocation8 + $0xb0] sm:$0xff]
    %v1558 = vld [vmem:[#allocation8 + $0xc0] sm:$0xff]
    %v1559 = vld [vmem:[#allocation8 + $0xc8] sm:$0xff]
    %v1560 = vld [vmem:[#allocation8 + $0xd0] sm:$0xff]
    %v1561 = vld [vmem:[#allocation8 + $0xe0] sm:$0xff]
    %v1562 = vld [vmem:[#allocation8 + $0xe8] sm:$0xff]
    %v1563 = vld [vmem:[#allocation8 + $0xf0] sm:$0xff]
    %v1564 = vld [vmem:[#allocation8 + $0x100] sm:$0xff]
    %v1565 = vld [vmem:[#allocation8 + $0x108] sm:$0xff]
    %v1566 = vld [vmem:[#allocation8 + $0x110] sm:$0xff]
    %v1567 = vld [vmem:[#allocation8 + $0x120] sm:$0xff]
    %v1568 = vld [vmem:[#allocation8 + $0x128] sm:$0xff]
    %v1569 = vld [vmem:[#allocation8 + $0x130] sm:$0xff]
    %v1570 = vld [vmem:[#allocation8 + $0x140] sm:$0xff]
    %v1571 = vld [vmem:[#allocation8 + $0x148] sm:$0xff]
    %v1572 = vld [vmem:[#allocation8 + $0x150] sm:$0xff]
    %v1573 = vld [vmem:[#allocation8 + $0x160] sm:$0xff]
    %v1574 = vld [vmem:[#allocation8 + $0x168] sm:$0xff]
    %v1575 = vld [vmem:[#allocation8 + $0x170] sm:$0xff]
    %v1576 = vld [vmem:[#allocation8 + $0x180] sm:$0xff]
    %v1577 = vld [vmem:[#allocation8 + $0x188] sm:$0xff]
    %v1578 = vld [vmem:[#allocation8 + $0x190] sm:$0xff]
    %v1579 = vld [vmem:[#allocation8 + $0x1a0] sm:$0xff]
    %v1580 = vld [vmem:[#allocation8 + $0x1a8] sm:$0xff]
    %v1581 = vld [vmem:[#allocation8 + $0x1b0] sm:$0xff]
    %v1582 = vld [vmem:[#allocation8 + $0x1c0] sm:$0xff]
    %v1583 = vld [vmem:[#allocation8 + $0x1c8] sm:$0xff]
    %v1584 = vld [vmem:[#allocation8 + $0x1d0] sm:$0xff]
    %v1585 = vld [vmem:[#allocation8 + $0x1e0] sm:$0xff]
    %v1586 = vld [vmem:[#allocation8 + $0x1e8] sm:$0xff]
    %v1587 = vld [vmem:[#allocation8 + $0x1f0] sm:$0xff]
    %1588 = vmatpush.msra.mxu0 %v1585
    %1589 = vmatpush.msra.mxu0 %v1582
    %1590 = vmatpush.msra.mxu0 %v1579
    %1591 = vmatpush.msra.mxu0 %v1576
    %1592 = vmatpush.msra.mxu0 %v1573
    %1593 = vmatpush.msra.mxu0 %v1570
    %1594 = vmatpush.msra.mxu0 %v1567
    %1595 = vmatpush.msra.mxu0 %v1564
    %1596 = vmatpush.msra.mxu0 %v1561
    %1597 = vmatpush.msra.mxu0 %v1558
    %1598 = vmatpush.msra.mxu0 %v1555
    %1599 = vmatpush.msra.mxu0 %v1552
    %1600 = vmatpush.msra.mxu0 %v1549
    %1601 = vmatpush.msra.mxu0 %v1546
    %1602 = vmatpush.msra.mxu0 %v1543
    %1603 = vmatpush.msra.mxu0 %v1540
    %1604 = vmatmul.f32.gmra.mxu0 %v1539
    %v1605 = vpop.f32.mrf.mxu0
    %v1606 = vadd.f32 0.0, %v1605
    %1607 = vdwg.mxu0
    %1608 = vmatpush.msra.mxu0 %v1586
    %1609 = vmatpush.msra.mxu0 %v1583
    %1610 = vmatpush.msra.mxu0 %v1580
    %1611 = vmatpush.msra.mxu0 %v1577
    %1612 = vmatpush.msra.mxu0 %v1574
    %1613 = vmatpush.msra.mxu0 %v1571
    %1614 = vmatpush.msra.mxu0 %v1568
    %1615 = vmatpush.msra.mxu0 %v1565
    %1616 = vmatpush.msra.mxu0 %v1562
    %1617 = vmatpush.msra.mxu0 %v1559
    %1618 = vmatpush.msra.mxu0 %v1556
    %1619 = vmatpush.msra.mxu0 %v1553
    %1620 = vmatpush.msra.mxu0 %v1550
    %1621 = vmatpush.msra.mxu0 %v1547
    %1622 = vmatpush.msra.mxu0 %v1544
    %1623 = vmatpush.msra.mxu0 %v1541
    %1624 = vmatmul.f32.gmra.mxu0 %v1539
    %v1625 = vpop.f32.mrf.mxu0
    %v1626 = vadd.f32 0.0, %v1625
    %1627 = vdwg.mxu0
    %1628 = vmatpush.msra.mxu0 %v1587
    %1629 = vmatpush.msra.mxu0 %v1584
    %1630 = vmatpush.msra.mxu0 %v1581
    %1631 = vmatpush.msra.mxu0 %v1578
    %1632 = vmatpush.msra.mxu0 %v1575
    %1633 = vmatpush.msra.mxu0 %v1572
    %1634 = vmatpush.msra.mxu0 %v1569
    %1635 = vmatpush.msra.mxu0 %v1566
    %1636 = vmatpush.msra.mxu0 %v1563
    %1637 = vmatpush.msra.mxu0 %v1560
    %1638 = vmatpush.msra.mxu0 %v1557
    %1639 = vmatpush.msra.mxu0 %v1554
    %1640 = vmatpush.msra.mxu0 %v1551
    %1641 = vmatpush.msra.mxu0 %v1548
    %1642 = vmatpush.msra.mxu0 %v1545
    %1643 = vmatpush.msra.mxu0 %v1542
    %1644 = vmatmul.f32.gmra.mxu0 %v1539
    %v1645 = vpop.f32.mrf.mxu0
    %v1646 = vadd.f32 0.0, %v1645
    %1647 = vdwg.mxu0
    %v1648 = vadd.f32 %v1606, %v1068
    %v1649 = vadd.f32 %v1626, %v1108
    %v1650 = vrot.slane %v1648, 4
    %v1651 = vadd.f32 %v1648, %v1650
    %v1652 = vrot.slane %v1651, 2
    %v1653 = vadd.f32 %v1651, %v1652
    %v1654 = vrot.slane %v1653, 1
    %v1655 = vadd.f32 %v1653, %v1654
    %v1656 = vrot.slane %v1649, 4
    %v1657 = vadd.f32 %v1649, %v1656
    %v1658 = vrot.slane %v1657, 2
    %v1659 = vadd.f32 %v1657, %v1658
    %v1660 = vrot.slane %v1659, 1
    %v1661 = vadd.f32 %v1659, %v1660
    %v1662 = vmul.f32 %v1655, %v1270
    %v1663 = vmul.f32 %v1661, %v1270
    %v1664 = vmul.f32 %v1648, %v1648
    %v1665 = vmul.f32 %v1649, %v1649
    %v1666 = vrot.slane %v1664, 4
    %v1667 = vadd.f32 %v1664, %v1666
    %v1668 = vrot.slane %v1667, 2
    %v1669 = vadd.f32 %v1667, %v1668
    %v1670 = vrot.slane %v1669, 1
    %v1671 = vadd.f32 %v1669, %v1670
    %v1672 = vrot.slane %v1665, 4
    %v1673 = vadd.f32 %v1665, %v1672
    %v1674 = vrot.slane %v1673, 2
    %v1675 = vadd.f32 %v1673, %v1674
    %v1676 = vrot.slane %v1675, 1
    %v1677 = vadd.f32 %v1675, %v1676
    %v1678 = vmul.f32 %v1671, %v1270
    %v1679 = vmul.f32 %v1677, %v1270
    %v1680 = vmul.f32 %v1662, %v1662
    %v1681 = vmul.f32 %v1663, %v1663
    %v1682 = vsub.f32 %v1678, %v1680
    %v1683 = vsub.f32 %v1679, %v1681
    %v1684 = vmax.f32 %v1682, 0.0
    %v1685 = vmax.f32 %v1683, 0.0
    %v1686 = vld [vmem:[#allocation11 + $0x11] sm:$0x3]
    %v1687 = vld [vmem:[#allocation11 + $0x19] sm:$0x3]
    %v1688 = vsub.f32 %v1648, %v1662
    %v1689 = vsub.f32 %v1649, %v1663
    %v1690 = vadd.f32 %v1684, 1e-05
    %v1691 = vadd.f32 %v1685, 1e-05
    %v1692 = vrsqrt.pop %v1690
    %v1693 = vmul.f32 %v1692, %v1690
    %v1694 = vmul.f32 %v1693, %v1692
    %v1695 = vmul.f32 0.5, %v1694
    %v1696 = vsub.f32 1.5, %v1695
    %v1697 = vmul.f32 %v1692, %v1696
    %vm1698 = vweird.f32 %v1690
    %vm1699 = vweird.f32 %v1692
    %vm1700 = vmor %vm1698, %vm1699
    %v1701 = vsel %vm1700, %v1692, %v1697
    %v1702 = vrsqrt.pop %v1691
    %v1703 = vmul.f32 %v1702, %v1691
    %v1704 = vmul.f32 %v1703, %v1702
    %v1705 = vmul.f32 0.5, %v1704
    %v1706 = vsub.f32 1.5, %v1705
    %v1707 = vmul.f32 %v1702, %v1706
    %vm1708 = vweird.f32 %v1691
    %vm1709 = vweird.f32 %v1702
    %vm1710 = vmor %vm1708, %vm1709
    %v1711 = vsel %vm1710, %v1702, %v1707
    %v1712 = vmul.f32 %v1688, %v1701
    %v1713 = vmul.f32 %v1689, %v1711
    %v1715 = vperm.slane %v1686, 0
    %v1716 = vperm.slane %v1686, 1
    %v1719 = vmul.f32 %v1712, %v1715
    %v1720 = vmul.f32 %v1713, %v1716
    %v1722 = vperm.slane %v1687, 0
    %v1723 = vperm.slane %v1687, 1
    %v1726 = vadd.f32 %v1719, %v1722
    %v1727 = vadd.f32 %v1720, %v1723
    %v1728 = vxor.u32 %v1726, 2147483648
    %v1729 = vxor.u32 %v1727, 2147483648
    %v1730 = vmul.f32 %v1728, 1.442695
    %v1731 = vpow.pop %v1730
    %v1732 = vmul.f32 %v1729, 1.442695
    %v1733 = vpow.pop %v1732
    %v1734 = vadd.f32 %v1731, 1.0
    %v1735 = vadd.f32 %v1733, 1.0
    %v1736 = vrcp.pop %v1734
    %v1737 = vmul.f32 %v1734, %v1736
    %v1738 = vsub.f32 1.0, %v1737
    %v1739 = vmul.f32 %v1736, %v1738
    %v1740 = vadd.f32 %v1736, %v1739
    %vm1741 = vweird.f32 %v1734
    %vm1742 = vweird.f32 %v1736
    %vm1743 = vmor %vm1741, %vm1742
    %v1744 = vsel %vm1743, %v1736, %v1740
    %v1745 = vand.u32 2147483647, %v1734
    %vm1746 = vcmp.eq.f32.partialorder %v1745, 8.507059e+37
    %v1747 = vand.u32 %v1734, 2147483648
    %v1748 = vor.u32 1.1754944e-38, %v1747
    %v1749 = vsel %vm1746, %v1748, %v1744
    %v1750 = vmul.f32 1.0, %v1749
    %v1751 = vrcp.pop %v1735
    %v1752 = vmul.f32 %v1735, %v1751
    %v1753 = vsub.f32 1.0, %v1752
    %v1754 = vmul.f32 %v1751, %v1753
    %v1755 = vadd.f32 %v1751, %v1754
    %vm1756 = vweird.f32 %v1735
    %vm1757 = vweird.f32 %v1751
    %vm1758 = vmor %vm1756, %vm1757
    %v1759 = vsel %vm1758, %v1751, %v1755
    %v1760 = vand.u32 2147483647, %v1735
    %vm1761 = vcmp.eq.f32.partialorder %v1760, 8.507059e+37
    %v1762 = vand.u32 %v1735, 2147483648
    %v1763 = vor.u32 1.1754944e-38, %v1762
    %v1764 = vsel %vm1761, %v1763, %v1759
    %v1765 = vmul.f32 1.0, %v1764
    %v1766 = vmul.f32 %v1726, %v1750
    %v1767 = vmul.f32 %v1727, %v1765
    %v1768 = vld [vmem:[#allocation10 + $0x50] sm:$0xff]
    %v1769 = vld [vmem:[#allocation10 + $0xa8] sm:$0xff]
    %v1770 = vld [vmem:[#allocation10 + $0x100] sm:$0xff]
    %v1771 = vld [vmem:[#allocation10 + $0x158] sm:$0xff]
    %v1772 = vld [vmem:[#allocation10 + $0x1b0] sm:$0xff]
    %v1773 = vld [vmem:[#allocation10 + $0x208] sm:$0xff]
    %v1774 = vld [vmem:[#allocation10 + $0x260] sm:$0xff]
    %v1775 = vld [vmem:[#allocation10 + $0x2b8] sm:$0xff]
    %v1776 = vld [vmem:[#allocation10 + $0x310] sm:$0xff]
    %v1777 = vld [vmem:[#allocation10 + $0x368] sm:$0xff]
    %v1778 = vld [vmem:[#allocation10 + $0x3c0] sm:$0xff]
    %v1779 = vld [vmem:[#allocation10 + $0x418] sm:$0xff]
    %v1780 = vld [vmem:[#allocation10 + $0x470] sm:$0xff]
    %v1781 = vld [vmem:[#allocation10 + $0x4c8] sm:$0xff]
    %v1782 = vld [vmem:[#allocation10 + $0x520] sm:$0xff]
    %v1783 = vld [vmem:[#allocation10 + $0x578] sm:$0xff]
    %v1784 = vld [vmem:[#allocation10 + $0x5d0] sm:$0xff]
    %v1785 = vld [vmem:[#allocation10 + $0x628] sm:$0xff]
    %v1786 = vld [vmem:[#allocation10 + $0x680] sm:$0xff]
    %v1787 = vld [vmem:[#allocation10 + $0x6d8] sm:$0xff]
    %v1788 = vld [vmem:[#allocation10 + $0x730] sm:$0xff]
    %v1789 = vld [vmem:[#allocation10 + $0x788] sm:$0xff]
    %v1790 = vld [vmem:[#allocation10 + $0x7e0] sm:$0xff]
    %v1791 = vld [vmem:[#allocation10 + $0x838] sm:$0xff]
    %v1792 = vld [vmem:[#allocation10 + $0x890] sm:$0xff]
    %v1793 = vld [vmem:[#allocation10 + $0x8e8] sm:$0xff]
    %v1794 = vld [vmem:[#allocation10 + $0x940] sm:$0xff]
    %v1795 = vld [vmem:[#allocation10 + $0x998] sm:$0xff]
    %v1796 = vld [vmem:[#allocation10 + $0x9f0] sm:$0xff]
    %v1797 = vld [vmem:[#allocation10 + $0xa48] sm:$0xff]
    %v1798 = vld [vmem:[#allocation10 + $0xaa0] sm:$0xff]
    %v1799 = vld [vmem:[#allocation10 + $0xaf8] sm:$0xff]
    %1800 = vmatpush.msra.mxu0 %v1783
    %1801 = vmatpush.msra.mxu0 %v1782
    %1802 = vmatpush.msra.mxu0 %v1781
    %1803 = vmatpush.msra.mxu0 %v1780
    %1804 = vmatpush.msra.mxu0 %v1779
    %1805 = vmatpush.msra.mxu0 %v1778
    %1806 = vmatpush.msra.mxu0 %v1777
    %1807 = vmatpush.msra.mxu0 %v1776
    %1808 = vmatpush.msra.mxu0 %v1775
    %1809 = vmatpush.msra.mxu0 %v1774
    %1810 = vmatpush.msra.mxu0 %v1773
    %1811 = vmatpush.msra.mxu0 %v1772
    %1812 = vmatpush.msra.mxu0 %v1771
    %1813 = vmatpush.msra.mxu0 %v1770
    %1814 = vmatpush.msra.mxu0 %v1769
    %1815 = vmatpush.msra.mxu0 %v1768
    %1816 = vmatmul.f32.gmra.mxu0 %v1766
    %v1817 = vpop.f32.mrf.mxu0
    %v1818 = vadd.f32 %v1148, %v1817
    %1819 = vdwg.mxu0
    %1820 = vmatpush.msra.mxu0 %v1799
    %1821 = vmatpush.msra.mxu0 %v1798
    %1822 = vmatpush.msra.mxu0 %v1797
    %1823 = vmatpush.msra.mxu0 %v1796
    %1824 = vmatpush.msra.mxu0 %v1795
    %1825 = vmatpush.msra.mxu0 %v1794
    %1826 = vmatpush.msra.mxu0 %v1793
    %1827 = vmatpush.msra.mxu0 %v1792
    %1828 = vmatpush.msra.mxu0 %v1791
    %1829 = vmatpush.msra.mxu0 %v1790
    %1830 = vmatpush.msra.mxu0 %v1789
    %1831 = vmatpush.msra.mxu0 %v1788
    %1832 = vmatpush.msra.mxu0 %v1787
    %1833 = vmatpush.msra.mxu0 %v1786
    %1834 = vmatpush.msra.mxu0 %v1785
    %1835 = vmatpush.msra.mxu0 %v1784
    %1836 = vmatmul.f32.gmra.mxu0 %v1767
    %v1837 = vpop.f32.mrf.mxu0
    %v1838 = vadd.f32 %v1818, %v1837
    %1839 = vdwg.mxu0
    %v1840 = vrot.slane %v1838, 4
    %v1841 = vadd.f32 %v1838, %v1840
    %v1842 = vrot.slane %v1841, 2
    %v1843 = vadd.f32 %v1841, %v1842
    %v1844 = vrot.slane %v1843, 1
    %v1845 = vadd.f32 %v1843, %v1844
    %v1846 = vmul.f32 %v1845, %v1270
    %v1847 = vmul.f32 %v1838, %v1838
    %v1848 = vrot.slane %v1847, 4
    %v1849 = vadd.f32 %v1847, %v1848
    %v1850 = vrot.slane %v1849, 2
    %v1851 = vadd.f32 %v1849, %v1850
    %v1852 = vrot.slane %v1851, 1
    %v1853 = vadd.f32 %v1851, %v1852
    %v1854 = vmul.f32 %v1853, %v1270
    %v1855 = vmul.f32 %v1846, %v1846
    %v1856 = vsub.f32 %v1854, %v1855
    %v1857 = vmax.f32 %v1856, 0.0
    %v1858 = vld [vmem:[#allocation11 + $0x13] sm:$0x1]
    %v1859 = vld [vmem:[#allocation11 + $0x1b] sm:$0x1]
    %v1860 = vsub.f32 %v1838, %v1846
    %v1861 = vadd.f32 %v1857, 1e-05
    %v1862 = vrsqrt.pop %v1861
    %v1863 = vmul.f32 %v1862, %v1861
    %v1864 = vmul.f32 %v1863, %v1862
    %v1865 = vmul.f32 0.5, %v1864
    %v1866 = vsub.f32 1.5, %v1865
    %v1867 = vmul.f32 %v1862, %v1866
    %vm1868 = vweird.f32 %v1861
    %vm1869 = vweird.f32 %v1862
    %vm1870 = vmor %vm1868, %vm1869
    %v1871 = vsel %vm1870, %v1862, %v1867
    %v1872 = vmul.f32 %v1860, %v1871
    %v1874 = vperm.slane %v1858, 0
    %v1876 = vmul.f32 %v1872, %v1874
    %v1878 = vperm.slane %v1859, 0
    %v1880 = vadd.f32 %v1876, %v1878
    %v1881 = vxor.u32 %v1880, 2147483648
    %v1882 = vmul.f32 %v1881, 1.442695
    %v1883 = vpow.pop %v1882
    %v1884 = vadd.f32 %v1883, 1.0
    %v1885 = vrcp.pop %v1884
    %v1886 = vmul.f32 %v1884, %v1885
    %v1887 = vsub.f32 1.0, %v1886
    %v1888 = vmul.f32 %v1885, %v1887
    %v1889 = vadd.f32 %v1885, %v1888
    %vm1890 = vweird.f32 %v1884
    %vm1891 = vweird.f32 %v1885
    %vm1892 = vmor %vm1890, %vm1891
    %v1893 = vsel %vm1892, %v1885, %v1889
    %v1894 = vand.u32 2147483647, %v1884
    %vm1895 = vcmp.eq.f32.partialorder %v1894, 8.507059e+37
    %v1896 = vand.u32 %v1884, 2147483648
    %v1897 = vor.u32 1.1754944e-38, %v1896
    %v1898 = vsel %vm1895, %v1897, %v1893
    %v1899 = vmul.f32 1.0, %v1898
    %v1900 = vmul.f32 %v1880, %v1899
    %v1901 = vld [vmem:[#allocation8 + $0x18] sm:$0xff]
    %v1902 = vld [vmem:[#allocation8 + $0x38] sm:$0xff]
    %v1903 = vld [vmem:[#allocation8 + $0x58] sm:$0xff]
    %v1904 = vld [vmem:[#allocation8 + $0x78] sm:$0xff]
    %v1905 = vld [vmem:[#allocation8 + $0x98] sm:$0xff]
    %v1906 = vld [vmem:[#allocation8 + $0xb8] sm:$0xff]
    %v1907 = vld [vmem:[#allocation8 + $0xd8] sm:$0xff]
    %v1908 = vld [vmem:[#allocation8 + $0xf8] sm:$0xff]
    %v1909 = vld [vmem:[#allocation8 + $0x118] sm:$0xff]
    %v1910 = vld [vmem:[#allocation8 + $0x138] sm:$0xff]
    %v1911 = vld [vmem:[#allocation8 + $0x158] sm:$0xff]
    %v1912 = vld [vmem:[#allocation8 + $0x178] sm:$0xff]
    %v1913 = vld [vmem:[#allocation8 + $0x198] sm:$0xff]
    %v1914 = vld [vmem:[#allocation8 + $0x1b8] sm:$0xff]
    %v1915 = vld [vmem:[#allocation8 + $0x1d8] sm:$0xff]
    %v1916 = vld [vmem:[#allocation8 + $0x1f8] sm:$0xff]
    %1917 = vmatpush.msra.mxu0 %v1916
    %1918 = vmatpush.msra.mxu0 %v1915
    %1919 = vmatpush.msra.mxu0 %v1914
    %1920 = vmatpush.msra.mxu0 %v1913
    %1921 = vmatpush.msra.mxu0 %v1912
    %1922 = vmatpush.msra.mxu0 %v1911
    %1923 = vmatpush.msra.mxu0 %v1910
    %1924 = vmatpush.msra.mxu0 %v1909
    %1925 = vmatpush.msra.mxu0 %v1908
    %1926 = vmatpush.msra.mxu0 %v1907
    %1927 = vmatpush.msra.mxu0 %v1906
    %1928 = vmatpush.msra.mxu0 %v1905
    %1929 = vmatpush.msra.mxu0 %v1904
    %1930 = vmatpush.msra.mxu0 %v1903
    %1931 = vmatpush.msra.mxu0 %v1902
    %1932 = vmatpush.msra.mxu0 %v1901
    %1933 = vmatmul.f32.gmra.mxu0 %v1900
    %v1934 = vpop.f32.mrf.mxu0
    %v1935 = vadd.f32 %v1646, %v1934
    %1936 = vdwg.mxu0
    %v1937 = vadd.f32 %v1935, %v1188
    %v1938 = vsel %vm1355, %v1937, 0.0
    %v1939 = vrot.slane %v1938, 4
    %v1940 = vadd.f32 %v1938, %v1939
    %v1941 = vrot.slane %v1940, 2
    %v1942 = vadd.f32 %v1940, %v1941
    %v1943 = vrot.slane %v1942, 1
    %v1944 = vadd.f32 %v1942, %v1943
    %v1945 = vmul.f32 %v1944, %v1270
    %v1946 = vmul.f32 %v1937, %v1937
    %v1947 = vsel %vm1355, %v1946, 0.0
    %v1948 = vrot.slane %v1947, 4
    %v1949 = vadd.f32 %v1947, %v1948
    %v1950 = vrot.slane %v1949, 2
    %v1951 = vadd.f32 %v1949, %v1950
    %v1952 = vrot.slane %v1951, 1
    %v1953 = vadd.f32 %v1951, %v1952
    %v1954 = vmul.f32 %v1953, %v1270
    %v1955 = vmul.f32 %v1945, %v1945
    %v1956 = vsub.f32 %v1954, %v1955
    %v1957 = vmax.f32 %v1956, 0.0
    %v1958 = vld [vmem:[#allocation11 + $0x14] sm:$0x1]
    %v1959 = vld [vmem:[#allocation11 + $0x1c] sm:$0x1]
    %v1960 = vsub.f32 %v1937, %v1945
    %v1961 = vadd.f32 %v1957, 1e-05
    %v1962 = vrsqrt.pop %v1961
    %v1963 = vmul.f32 %v1962, %v1961
    %v1964 = vmul.f32 %v1963, %v1962
    %v1965 = vmul.f32 0.5, %v1964
    %v1966 = vsub.f32 1.5, %v1965
    %v1967 = vmul.f32 %v1962, %v1966
    %vm1968 = vweird.f32 %v1961
    %vm1969 = vweird.f32 %v1962
    %vm1970 = vmor %vm1968, %vm1969
    %v1971 = vsel %vm1970, %v1962, %v1967
    %v1972 = vmul.f32 %v1960, %v1971
    %v1974 = vperm.slane %v1958, 0
    %v1976 = vmul.f32 %v1972, %v1974
    %v1978 = vperm.slane %v1959, 0
    %v1980 = vadd.f32 %v1976, %v1978
    %v1981 = vxor.u32 %v1980, 2147483648
    %v1982 = vmul.f32 %v1981, 1.442695
    %v1983 = vpow.pop %v1982
    %v1984 = vadd.f32 %v1983, 1.0
    %v1985 = vrcp.pop %v1984
    %v1986 = vmul.f32 %v1984, %v1985
    %v1987 = vsub.f32 1.0, %v1986
    %v1988 = vmul.f32 %v1985, %v1987
    %v1989 = vadd.f32 %v1985, %v1988
    %vm1990 = vweird.f32 %v1984
    %vm1991 = vweird.f32 %v1985
    %vm1992 = vmor %vm1990, %vm1991
    %v1993 = vsel %vm1992, %v1985, %v1989
    %v1994 = vand.u32 2147483647, %v1984
    %vm1995 = vcmp.eq.f32.partialorder %v1994, 8.507059e+37
    %v1996 = vand.u32 %v1984, 2147483648
    %v1997 = vor.u32 1.1754944e-38, %v1996
    %v1998 = vsel %vm1995, %v1997, %v1993
    %v1999 = vmul.f32 1.0, %v1998
    %v2000 = vmul.f32 %v1980, %v1999
    %v2001 = vld [vmem:[#allocation7 + $0x10] sm:$0xff]
    %v2002 = vld [vmem:[#allocation7 + $0x28] sm:$0xff]
    %v2003 = vld [vmem:[#allocation7 + $0x40] sm:$0xff]
    %v2004 = vld [vmem:[#allocation7 + $0x58] sm:$0xff]
    %v2005 = vld [vmem:[#allocation7 + $0x70] sm:$0xff]
    %v2006 = vld [vmem:[#allocation7 + $0x88] sm:$0xff]
    %v2007 = vld [vmem:[#allocation7 + $0xa0] sm:$0xff]
    %v2008 = vld [vmem:[#allocation7 + $0xb8] sm:$0xff]
    %v2010 = vsel %vm1355, %v2000, 0
    %2012 = vmatpush.msra.mxu0 0.0
    %2013 = vmatpush.msra.mxu0 0.0
    %2014 = vmatpush.msra.mxu0 0.0
    %2015 = vmatpush.msra.mxu0 0.0
    %2016 = vmatpush.msra.mxu0 0.0
    %2017 = vmatpush.msra.mxu0 0.0
    %2018 = vmatpush.msra.mxu0 0.0
    %2019 = vmatpush.msra.mxu0 0.0
    %2020 = vmatpush.msra.mxu0 %v2008
    %2021 = vmatpush.msra.mxu0 %v2007
    %2022 = vmatpush.msra.mxu0 %v2006
    %2023 = vmatpush.msra.mxu0 %v2005
    %2024 = vmatpush.msra.mxu0 %v2004
    %2025 = vmatpush.msra.mxu0 %v2003
    %2026 = vmatpush.msra.mxu0 %v2002
    %2027 = vmatpush.msra.mxu0 %v2001
    %2028 = vmatmul.f32.gmra.mxu0 %v2010
    %v2029 = vpop.f32.mrf.mxu0
    %v2030 = vadd.f32 %v1476, %v2029
    %2031 = vdwg.mxu0
    %v2032 = vadd.f32 %v2030, %v1228
    %v2033 = vsel %vm1234, %v2032, 0.0
    %v2034 = vrot.slane %v2033, 4
    %v2035 = vadd.f32 %v2033, %v2034
    %v2036 = vrot.slane %v2035, 2
    %v2037 = vadd.f32 %v2035, %v2036
    %v2038 = vrot.slane %v2037, 1
    %v2039 = vadd.f32 %v2037, %v2038
    %v2040 = vmul.f32 %v2039, %v1270
    %v2041 = vmul.f32 %v2032, %v2032
    %v2042 = vsel %vm1234, %v2041, 0.0
    %v2043 = vrot.slane %v2042, 4
    %v2044 = vadd.f32 %v2042, %v2043
    %v2045 = vrot.slane %v2044, 2
    %v2046 = vadd.f32 %v2044, %v2045
    %v2047 = vrot.slane %v2046, 1
    %v2048 = vadd.f32 %v2046, %v2047
    %v2049 = vmul.f32 %v2048, %v1270
    %v2050 = vmul.f32 %v2040, %v2040
    %v2051 = vsub.f32 %v2049, %v2050
    %v2052 = vmax.f32 %v2051, 0.0
    %v2053 = vld [vmem:[#allocation11 + $0x15] sm:$0x1]
    %v2054 = vld [vmem:[#allocation11 + $0x1d] sm:$0x1]
    %v2055 = vsub.f32 %v2032, %v2040
    %v2056 = vadd.f32 %v2052, 1e-05
    %v2057 = vrsqrt.pop %v2056
    %v2058 = vmul.f32 %v2057, %v2056
    %v2059 = vmul.f32 %v2058, %v2057
    %v2060 = vmul.f32 0.5, %v2059
    %v2061 = vsub.f32 1.5, %v2060
    %v2062 = vmul.f32 %v2057, %v2061
    %vm2063 = vweird.f32 %v2056
    %vm2064 = vweird.f32 %v2057
    %vm2065 = vmor %vm2063, %vm2064
    %v2066 = vsel %vm2065, %v2057, %v2062
    %v2067 = vmul.f32 %v2055, %v2066
    %v2069 = vperm.slane %v2053, 0
    %v2071 = vmul.f32 %v2067, %v2069
    %v2073 = vperm.slane %v2054, 0
    %v2075 = vadd.f32 %v2071, %v2073
    %v2076 = vxor.u32 %v2075, 2147483648
    %v2077 = vmul.f32 %v2076, 1.442695
    %v2078 = vpow.pop %v2077
    %v2079 = vadd.f32 %v2078, 1.0
    %v2080 = vrcp.pop %v2079
    %v2081 = vmul.f32 %v2079, %v2080
    %v2082 = vsub.f32 1.0, %v2081
    %v2083 = vmul.f32 %v2080, %v2082
    %v2084 = vadd.f32 %v2080, %v2083
    %vm2085 = vweird.f32 %v2079
    %vm2086 = vweird.f32 %v2080
    %vm2087 = vmor %vm2085, %vm2086
    %v2088 = vsel %vm2087, %v2080, %v2084
    %v2089 = vand.u32 2147483647, %v2079
    %vm2090 = vcmp.eq.f32.partialorder %v2089, 8.507059e+37
    %v2091 = vand.u32 %v2079, 2147483648
    %v2092 = vor.u32 1.1754944e-38, %v2091
    %v2093 = vsel %vm2090, %v2092, %v2088
    %v2094 = vmul.f32 1.0, %v2093
    %v2095 = vmul.f32 %v2075, %v2094
    %v2096 = vld [vmem:[#allocation5 + $0x10] sm:$0xff]
    %v2097 = vld [vmem:[#allocation5 + $0x28] sm:$0xff]
    %v2098 = vld [vmem:[#allocation5 + $0x40] sm:$0xff]
    %v2099 = vld [vmem:[#allocation5 + $0x58] sm:$0xff]
    %2101 = vrot.lane.b32.xlu0 %v1352, 64
    %v2102 = vpop.permute.xlu0 %2101
    %v2105 = vsel %vm1234, %v2095, 0
    %2107 = vmatpush.msra.mxu0 0.0
    %2108 = vmatpush.msra.mxu0 0.0
    %2109 = vmatpush.msra.mxu0 0.0
    %2110 = vmatpush.msra.mxu0 0.0
    %2111 = vmatpush.msra.mxu0 0.0
    %2112 = vmatpush.msra.mxu0 0.0
    %2113 = vmatpush.msra.mxu0 0.0
    %2114 = vmatpush.msra.mxu0 0.0
    %2115 = vmatpush.msra.mxu0 0.0
    %2116 = vmatpush.msra.mxu0 0.0
    %2117 = vmatpush.msra.mxu0 0.0
    %2118 = vmatpush.msra.mxu0 0.0
    %2119 = vmatpush.msra.mxu0 %v2099
    %2120 = vmatpush.msra.mxu0 %v2098
    %2121 = vmatpush.msra.mxu0 %v2097
    %2122 = vmatpush.msra.mxu0 %v2096
    %2123 = vmatmul.f32.gmra.mxu0 %v2105
    %v2124 = vpop.f32.mrf.mxu0
    %v2125 = vadd.f32 %v2102, %v2124
    %2126 = vdwg.mxu0
    %v2127 = vld [vmem:[#allocation11 + $0x1e] sm:$0x1]
    %v2129 = vperm.slane %v2127, 0
    %v2131 = vadd.f32 %v2125, %v2129
    %v2132 = vmul.f32 %v114, 2.0
    %v2133 = vmul.f32 %v2132, 3.218876
    %v2134 = vmul.f32 %v2133, 1.442695
    %v2135 = vpow.pop %v2134
    %v2136 = vsub.f32 %v2135, 1.0
    %v2137 = vrcp.pop 6.437752
    %v2138 = vmul.f32 6.437752, %v2137
    %v2139 = vsub.f32 1.0, %v2138
    %v2140 = vmul.f32 %v2137, %v2139
    %v2141 = vadd.f32 %v2137, %v2140
    %vm2142 = vweird.f32 %v2137
    %v2143 = vsel %vm2142, %v2137, %v2141
    %v2144 = vmul.f32 %v2136, %v2143
    %v2145 = vrsqrt.pop %v2144
    %v2146 = vmul.f32 %v2145, %v2144
    %v2147 = vmul.f32 %v2146, %v2145
    %v2148 = vmul.f32 0.5, %v2147
    %v2149 = vsub.f32 1.5, %v2148
    %v2150 = vmul.f32 %v2145, %v2149
    %vm2151 = vweird.f32 %v2144
    %vm2152 = vweird.f32 %v2145
    %vm2153 = vmor %vm2151, %vm2152
    %v2154 = vsel %vm2153, %v2145, %v2150
    %2156 = vset.pattern.permute.xlu0 16
    %2157 = vperm.xlu0 %2156, %v2154
    %v2158 = vpop.permute.xlu0 %2157
    %v2160 = vmul.f32 %v2131, %v2158
    %vm2161 = vcmask 130048
    %2162 = vst.msk [vmem:[#allocation13] sm:$0xff] %vm2161, %v2160
    // Predicated region
    $region50: #{tpu_custom_call.1} parent=1 // pred_check
      _
    $region51: #{tpu_custom_call.1} parent=1 // pred_check_branch
      %2164 = sbr.rel (0) target = $region53
    $region52: #{tpu_custom_call.1} parent=1 // pred_region
      %2166 = vsyncadd [#allocation4], 0
      %s2168 = sshll.u32 [#allocation13], 4
      %s2169 = int_to_ptr.vmem [resolvable:$true] %s2168
      %s2170 = sshll.u32 %s6, 4
      %s2171 = int_to_ptr.hbm [resolvable:$true] %s2170
      %2173 = dma.vmem_to_hbm [thread:$0]  %s2169, 128, %s2171, [#allocation4]
    $region53: #{tpu_custom_call.1} parent=1 // pred_fallthru
      _
    // Predicated region
    $region54: #{tpu_custom_call.1} parent=1 // pred_check
      _
    $region55: #{tpu_custom_call.1} parent=1 // pred_check_branch
      %2175 = sbr.rel (0) target = $region57
    $region56: #{tpu_custom_call.1} parent=1 // pred_region
      %2177 = dma.done [#allocation4], 128
    $region57: #{tpu_custom_call.1} parent=1 // pred_fallthru
      _
    %2178 = vsyncpa [#allocation3], 1
    %2179 = vsyncpa [#allocation6], 1
    %2180 = vsyncpa [#allocation9], 1
    %2181 = vsyncpa [#allocation12], 1
    %2182 = vsyncpa [#allocation4], 1

</llo_original>
